<compile_context>
chip_gen: v7x
topology: tpu7x:2x2x1
jax: 0.10.0
libtpu: 0.0.40
codegen_flags: <defaults>
</compile_context>

<pallas_src>
import jax
import jax.numpy as jnp
from jax.experimental import pallas as pl
from jax.experimental.pallas import tpu as pltpu

_LANE = 128      # vreg lane width
_SUBLANE = 8     # f32 sublane count


def _round_up(n, m):
    return ((n + m - 1) // m) * m


# ----------------------------------------------------------------------------- kernel
def _policy_net_kernel(x_ref,
                       w1_ref, b1_ref,
                       w2_ref, b2_ref,
                       w3_ref, b3_ref,
                       w4_ref, b4_ref,
                       w5_ref, b5_ref,
                       o_ref):
    """One batch tile of the full 5-layer MLP.  x/o are (TB, feat) tiles,
    weights are full (in_pad, out_pad) bf16 arrays, biases (1, out_pad) f32."""

    def affine(h_bf16, w_ref, b_ref):
        # bf16 x bf16 -> f32 accumulation on the MXU, bias add in f32 on the VPU.
        acc = jnp.dot(h_bf16, w_ref[...], preferred_element_type=jnp.float32)
        return acc + b_ref[...]

    h = x_ref[...]                                                     # bf16
    h = jnp.maximum(affine(h, w1_ref, b1_ref), 0.0).astype(jnp.bfloat16)
    h = jnp.maximum(affine(h, w2_ref, b2_ref), 0.0).astype(jnp.bfloat16)
    h = jnp.maximum(affine(h, w3_ref, b3_ref), 0.0).astype(jnp.bfloat16)
    h = jnp.maximum(affine(h, w4_ref, b4_ref), 0.0).astype(jnp.bfloat16)
    y = affine(h, w5_ref, b5_ref)                                      # f32
    o_ref[...] = jnp.tanh(y)


# ----------------------------------------------------------------------------- params
def init_policy_net_params(key, observations, actions):
    """Deterministic f32 init matching PyTorch nn.Linear default
    (U(-1/sqrt(fan_in), +1/sqrt(fan_in))), weights stored pre-transposed as
    (in_features, out_features)."""
    sizes = [(observations, 200), (200, 300), (300, 400), (400, 400), (400, actions)]
    params = []
    for (fan_in, fan_out) in sizes:
        key, kw, kb = jax.random.split(key, 3)
        bound = 1.0 / jnp.sqrt(jnp.float32(fan_in))
        w_t = jax.random.uniform(kw, (fan_in, fan_out), jnp.float32, -bound, bound)
        b = jax.random.uniform(kb, (1, fan_out), jnp.float32, -bound, bound)
        params.append((w_t, b))
    return params


def pad_policy_net_params(params):
    """Zero-pad every (in, out) weight / (1, out) bias to 128-multiples and
    cast weights to bf16.  Do this ONCE, outside the rollout / training loop."""
    padded = []
    for w, b in params:
        fi, fo = w.shape
        fi_p, fo_p = _round_up(fi, _LANE), _round_up(fo, _LANE)
        w_p = jnp.zeros((fi_p, fo_p), jnp.bfloat16).at[:fi, :fo].set(
            w.astype(jnp.bfloat16))
        b_p = jnp.zeros((1, fo_p), jnp.float32).at[:, :fo].set(
            b.astype(jnp.float32))
        padded.append((w_p, b_p))
    return padded


# ----------------------------------------------------------------------------- wrapper
def policy_net_forward(x, padded_params, actions, *, batch_tile=256):
    """x: (batch, observations) f32.  padded_params: output of
    pad_policy_net_params.  Returns (batch, actions) f32 in [-1, 1]."""
    batch, obs = x.shape
    obs_pad = padded_params[0][0].shape[0]
    act_pad = padded_params[-1][0].shape[1]

    # Batch tiling: pad to a sublane multiple; large batches get a "parallel"
    # grid axis (TB rows per step) so v7x can shard tiles across both cores.
    if batch >= batch_tile:
        tb = batch_tile
    else:
        tb = _round_up(batch, _SUBLANE)
    batch_pad = _round_up(batch, tb)
    grid = (batch_pad // tb,)

    # Lane-aligned, bf16 input slab (zero rows/cols beyond the real data).
    x_p = jnp.zeros((batch_pad, obs_pad), jnp.bfloat16)
    x_p = x_p.at[:batch, :obs].set(x.astype(jnp.bfloat16))

    flat_args = [x_p]
    in_specs = [pl.BlockSpec((tb, obs_pad), lambda i: (i, 0))]
    for w, b in padded_params:
        flat_args += [w, b]
        # Full-array blocks; same block index every step => weights/biases stay
        # resident in VMEM across all batch tiles.
        in_specs += [pl.BlockSpec(w.shape, lambda i: (0, 0)),
                     pl.BlockSpec(b.shape, lambda i: (0, 0))]

    # Advisory cost estimate so XLA can schedule around this small call.
    dims = [obs_pad] + [w.shape[1] for w, _ in padded_params]
    flops = 2 * batch_pad * sum(dims[i] * dims[i + 1] for i in range(len(dims) - 1))
    weight_bytes = sum(int(w.size) * w.dtype.itemsize + int(b.size) * b.dtype.itemsize
                       for w, b in padded_params)
    bytes_accessed = weight_bytes + int(x_p.size) * 2 + batch_pad * act_pad * 4
    cost = pl.CostEstimate(flops=int(flops),
                           transcendentals=int(batch_pad * act_pad),
                           bytes_accessed=int(bytes_accessed))

    out_p = pl.pallas_call(
        _policy_net_kernel,
        out_shape=jax.ShapeDtypeStruct((batch_pad, act_pad), jnp.float32),
        grid=grid,
        in_specs=in_specs,
        out_specs=pl.BlockSpec((tb, act_pad), lambda i: (i, 0)),
        compiler_params=pltpu.CompilerParams(
            dimension_semantics=("parallel",)),
        cost_estimate=cost,
    )(*flat_args)

    return out_p[:batch, :actions]


# ----------------------------------------------------------------------------- reference
def policy_net_reference(x, params):
    """Pure-JAX f32 reference (unpadded weights)."""
    h = x
    for i, (w, b) in enumerate(params):
        h = h @ w + b
        if i < len(params) - 1:
            h = jnp.maximum(h, 0.0)
        else:
            h = jnp.tanh(h)
    return h


# ----------------------------------------------------------------------------- test
if __name__ == "__main__":
    observations = 24   # e.g. dm_control walker-ish observation size
    actions = 6
    batch = 2

    key = jax.random.PRNGKey(0)
    key, kx = jax.random.split(key)
    x = jax.random.normal(kx, (batch, observations), jnp.float32)

    params = init_policy_net_params(key, observations, actions)
    padded_params = pad_policy_net_params(params)   # done once, reused per call

    # Small-batch path (grid = 1).
    out = policy_net_forward(x, padded_params, actions)
    out = jax.block_until_ready(out)
    ref = policy_net_reference(x, params)
    assert out.shape == (batch, actions)
    # bf16 weights/activations -> loosened tolerance vs. the f32 reference.
    assert jnp.allclose(out, ref, atol=3e-2, rtol=3e-2), "mismatch vs reference (small batch)"

    # Large-batch path (exercises the parallel batch grid: 300 -> pad 512, 2 tiles).
    key, kx2 = jax.random.split(key)
    big_batch = 300
    x_big = jax.random.normal(kx2, (big_batch, observations), jnp.float32)
    out_big = jax.block_until_ready(policy_net_forward(x_big, padded_params, actions))
    ref_big = policy_net_reference(x_big, params)
    assert out_big.shape == (big_batch, actions)
    assert jnp.allclose(out_big, ref_big, atol=3e-2, rtol=3e-2), "mismatch vs reference (big batch)"

    print("KERNEL_OK")
</pallas_src>

<mosaic_0001>
module attributes {stable_mosaic.version = 11 : i64} {
  func.func @_policy_net_kernel(%arg0: i32, %arg1: memref<8x128xbf16, #tpu.memory_space<vmem>>, %arg2: memref<128x256xbf16, #tpu.memory_space<vmem>>, %arg3: memref<1x256xf32, #tpu.memory_space<vmem>>, %arg4: memref<256x384xbf16, #tpu.memory_space<vmem>>, %arg5: memref<1x384xf32, #tpu.memory_space<vmem>>, %arg6: memref<384x512xbf16, #tpu.memory_space<vmem>>, %arg7: memref<1x512xf32, #tpu.memory_space<vmem>>, %arg8: memref<512x512xbf16, #tpu.memory_space<vmem>>, %arg9: memref<1x512xf32, #tpu.memory_space<vmem>>, %arg10: memref<512x128xbf16, #tpu.memory_space<vmem>>, %arg11: memref<1x128xf32, #tpu.memory_space<vmem>>, %arg12: memref<8x128xf32, #tpu.memory_space<vmem>>) attributes {dimension_semantics = [#tpu.dimension_semantics<parallel>], iteration_bounds = array<i64: 1>, scalar_prefetch = 0 : i64, scratch_operands = 0 : i64, tpu.core_type = #tpu.core_type<tc>, window_params = [{transform_indices = @transform_0, window_bounds = array<i64: 8, 128>}, {pipeline_mode = #tpu.pipeline_mode<synchronous>, transform_indices = @transform_1, window_bounds = array<i64: 128, 256>}, {pipeline_mode = #tpu.pipeline_mode<synchronous>, transform_indices = @transform_2, window_bounds = array<i64: 1, 256>}, {pipeline_mode = #tpu.pipeline_mode<synchronous>, transform_indices = @transform_3, window_bounds = array<i64: 256, 384>}, {pipeline_mode = #tpu.pipeline_mode<synchronous>, transform_indices = @transform_4, window_bounds = array<i64: 1, 384>}, {pipeline_mode = #tpu.pipeline_mode<synchronous>, transform_indices = @transform_5, window_bounds = array<i64: 384, 512>}, {pipeline_mode = #tpu.pipeline_mode<synchronous>, transform_indices = @transform_6, window_bounds = array<i64: 1, 512>}, {pipeline_mode = #tpu.pipeline_mode<synchronous>, transform_indices = @transform_7, window_bounds = array<i64: 512, 512>}, {pipeline_mode = #tpu.pipeline_mode<synchronous>, transform_indices = @transform_8, window_bounds = array<i64: 1, 512>}, {pipeline_mode = #tpu.pipeline_mode<synchronous>, transform_indices = @transform_9, window_bounds = array<i64: 512, 128>}, {pipeline_mode = #tpu.pipeline_mode<synchronous>, transform_indices = @transform_10, window_bounds = array<i64: 1, 128>}, {transform_indices = @transform_11, window_bounds = array<i64: 8, 128>}]} {
    %c0 = arith.constant 0 : index
    %c0_0 = arith.constant 0 : index
    %0 = vector.load %arg1[%c0, %c0_0] : memref<8x128xbf16, #tpu.memory_space<vmem>>, vector<8x128xbf16>
    %c0_1 = arith.constant 0 : index
    %c0_2 = arith.constant 0 : index
    %1 = vector.load %arg2[%c0_1, %c0_2] : memref<128x256xbf16, #tpu.memory_space<vmem>>, vector<128x256xbf16>
    %cst = arith.constant dense<0.000000e+00> : vector<8x256xf32>
    %2 = tpu.matmul %0, %1, %cst {dimension_numbers = #tpu.dot_dimension_numbers<[1], [0], [0], [1], [0, 0, 1, 1], [], []>} : vector<8x128xbf16>, vector<128x256xbf16>, vector<8x256xf32> -> vector<8x256xf32>
    %c0_3 = arith.constant 0 : index
    %c0_4 = arith.constant 0 : index
    %3 = vector.load %arg3[%c0_3, %c0_4] : memref<1x256xf32, #tpu.memory_space<vmem>>, vector<1x256xf32>
    %4 = vector.broadcast %3 : vector<1x256xf32> to vector<8x256xf32>
    %5 = arith.addf %2, %4 : vector<8x256xf32>
    %cst_5 = arith.constant 0.000000e+00 : f32
    %6 = vector.broadcast %cst_5 : f32 to vector<8x256xf32>
    %7 = arith.maximumf %5, %6 : vector<8x256xf32>
    %8 = arith.truncf %7 : vector<8x256xf32> to vector<8x256xbf16>
    %c0_6 = arith.constant 0 : index
    %c0_7 = arith.constant 0 : index
    %9 = vector.load %arg4[%c0_6, %c0_7] : memref<256x384xbf16, #tpu.memory_space<vmem>>, vector<256x384xbf16>
    %cst_8 = arith.constant dense<0.000000e+00> : vector<8x384xf32>
    %10 = tpu.matmul %8, %9, %cst_8 {dimension_numbers = #tpu.dot_dimension_numbers<[1], [0], [0], [1], [0, 0, 1, 1], [], []>} : vector<8x256xbf16>, vector<256x384xbf16>, vector<8x384xf32> -> vector<8x384xf32>
    %c0_9 = arith.constant 0 : index
    %c0_10 = arith.constant 0 : index
    %11 = vector.load %arg5[%c0_9, %c0_10] : memref<1x384xf32, #tpu.memory_space<vmem>>, vector<1x384xf32>
    %12 = vector.broadcast %11 : vector<1x384xf32> to vector<8x384xf32>
    %13 = arith.addf %10, %12 : vector<8x384xf32>
    %cst_11 = arith.constant 0.000000e+00 : f32
    %14 = vector.broadcast %cst_11 : f32 to vector<8x384xf32>
    %15 = arith.maximumf %13, %14 : vector<8x384xf32>
    %16 = arith.truncf %15 : vector<8x384xf32> to vector<8x384xbf16>
    %c0_12 = arith.constant 0 : index
    %c0_13 = arith.constant 0 : index
    %17 = vector.load %arg6[%c0_12, %c0_13] : memref<384x512xbf16, #tpu.memory_space<vmem>>, vector<384x512xbf16>
    %cst_14 = arith.constant dense<0.000000e+00> : vector<8x512xf32>
    %18 = tpu.matmul %16, %17, %cst_14 {dimension_numbers = #tpu.dot_dimension_numbers<[1], [0], [0], [1], [0, 0, 1, 1], [], []>} : vector<8x384xbf16>, vector<384x512xbf16>, vector<8x512xf32> -> vector<8x512xf32>
    %c0_15 = arith.constant 0 : index
    %c0_16 = arith.constant 0 : index
    %19 = vector.load %arg7[%c0_15, %c0_16] : memref<1x512xf32, #tpu.memory_space<vmem>>, vector<1x512xf32>
    %20 = vector.broadcast %19 : vector<1x512xf32> to vector<8x512xf32>
    %21 = arith.addf %18, %20 : vector<8x512xf32>
    %cst_17 = arith.constant 0.000000e+00 : f32
    %22 = vector.broadcast %cst_17 : f32 to vector<8x512xf32>
    %23 = arith.maximumf %21, %22 : vector<8x512xf32>
    %24 = arith.truncf %23 : vector<8x512xf32> to vector<8x512xbf16>
    %c0_18 = arith.constant 0 : index
    %c0_19 = arith.constant 0 : index
    %25 = vector.load %arg8[%c0_18, %c0_19] : memref<512x512xbf16, #tpu.memory_space<vmem>>, vector<512x512xbf16>
    %cst_20 = arith.constant dense<0.000000e+00> : vector<8x512xf32>
    %26 = tpu.matmul %24, %25, %cst_20 {dimension_numbers = #tpu.dot_dimension_numbers<[1], [0], [0], [1], [0, 0, 1, 1], [], []>} : vector<8x512xbf16>, vector<512x512xbf16>, vector<8x512xf32> -> vector<8x512xf32>
    %c0_21 = arith.constant 0 : index
    %c0_22 = arith.constant 0 : index
    %27 = vector.load %arg9[%c0_21, %c0_22] : memref<1x512xf32, #tpu.memory_space<vmem>>, vector<1x512xf32>
    %28 = vector.broadcast %27 : vector<1x512xf32> to vector<8x512xf32>
    %29 = arith.addf %26, %28 : vector<8x512xf32>
    %cst_23 = arith.constant 0.000000e+00 : f32
    %30 = vector.broadcast %cst_23 : f32 to vector<8x512xf32>
    %31 = arith.maximumf %29, %30 : vector<8x512xf32>
    %32 = arith.truncf %31 : vector<8x512xf32> to vector<8x512xbf16>
    %c0_24 = arith.constant 0 : index
    %c0_25 = arith.constant 0 : index
    %33 = vector.load %arg10[%c0_24, %c0_25] : memref<512x128xbf16, #tpu.memory_space<vmem>>, vector<512x128xbf16>
    %cst_26 = arith.constant dense<0.000000e+00> : vector<8x128xf32>
    %34 = tpu.matmul %32, %33, %cst_26 {dimension_numbers = #tpu.dot_dimension_numbers<[1], [0], [0], [1], [0, 0, 1, 1], [], []>} : vector<8x512xbf16>, vector<512x128xbf16>, vector<8x128xf32> -> vector<8x128xf32>
    %c0_27 = arith.constant 0 : index
    %c0_28 = arith.constant 0 : index
    %35 = vector.load %arg11[%c0_27, %c0_28] : memref<1x128xf32, #tpu.memory_space<vmem>>, vector<1x128xf32>
    %36 = vector.broadcast %35 : vector<1x128xf32> to vector<8x128xf32>
    %37 = arith.addf %34, %36 : vector<8x128xf32>
    %38 = math.tanh %37 : vector<8x128xf32>
    %c0_29 = arith.constant 0 : index
    %c0_30 = arith.constant 0 : index
    %39 = vector.load %arg12[%c0_29, %c0_30] : memref<8x128xf32, #tpu.memory_space<vmem>>, vector<8x128xf32>
    tpu.vector_store %arg12[%c0_29, %c0_30], %38 {strides = array<i32>} : memref<8x128xf32, #tpu.memory_space<vmem>>, vector<8x128xf32>,
    return
  }
  func.func @transform_0(%arg0: i32) -> (i32, i32) {
    %c0_i32 = arith.constant 0 : i32
    %c0_i32_0 = arith.constant 0 : i32
    return %arg0, %c0_i32 : i32, i32
  }
  func.func @transform_1(%arg0: i32) -> (i32, i32) {
    %c0_i32 = arith.constant 0 : i32
    %c0_i32_0 = arith.constant 0 : i32
    %c0_i32_1 = arith.constant 0 : i32
    return %c0_i32, %c0_i32_0 : i32, i32
  }
  func.func @transform_2(%arg0: i32) -> (i32, i32) {
    %c0_i32 = arith.constant 0 : i32
    %c0_i32_0 = arith.constant 0 : i32
    %c0_i32_1 = arith.constant 0 : i32
    return %c0_i32, %c0_i32_0 : i32, i32
  }
  func.func @transform_3(%arg0: i32) -> (i32, i32) {
    %c0_i32 = arith.constant 0 : i32
    %c0_i32_0 = arith.constant 0 : i32
    %c0_i32_1 = arith.constant 0 : i32
    return %c0_i32, %c0_i32_0 : i32, i32
  }
  func.func @transform_4(%arg0: i32) -> (i32, i32) {
    %c0_i32 = arith.constant 0 : i32
    %c0_i32_0 = arith.constant 0 : i32
    %c0_i32_1 = arith.constant 0 : i32
    return %c0_i32, %c0_i32_0 : i32, i32
  }
  func.func @transform_5(%arg0: i32) -> (i32, i32) {
    %c0_i32 = arith.constant 0 : i32
    %c0_i32_0 = arith.constant 0 : i32
    %c0_i32_1 = arith.constant 0 : i32
    return %c0_i32, %c0_i32_0 : i32, i32
  }
  func.func @transform_6(%arg0: i32) -> (i32, i32) {
    %c0_i32 = arith.constant 0 : i32
    %c0_i32_0 = arith.constant 0 : i32
    %c0_i32_1 = arith.constant 0 : i32
    return %c0_i32, %c0_i32_0 : i32, i32
  }
  func.func @transform_7(%arg0: i32) -> (i32, i32) {
    %c0_i32 = arith.constant 0 : i32
    %c0_i32_0 = arith.constant 0 : i32
    %c0_i32_1 = arith.constant 0 : i32
    return %c0_i32, %c0_i32_0 : i32, i32
  }
  func.func @transform_8(%arg0: i32) -> (i32, i32) {
    %c0_i32 = arith.constant 0 : i32
    %c0_i32_0 = arith.constant 0 : i32
    %c0_i32_1 = arith.constant 0 : i32
    return %c0_i32, %c0_i32_0 : i32, i32
  }
  func.func @transform_9(%arg0: i32) -> (i32, i32) {
    %c0_i32 = arith.constant 0 : i32
    %c0_i32_0 = arith.constant 0 : i32
    %c0_i32_1 = arith.constant 0 : i32
    return %c0_i32, %c0_i32_0 : i32, i32
  }
  func.func @transform_10(%arg0: i32) -> (i32, i32) {
    %c0_i32 = arith.constant 0 : i32
    %c0_i32_0 = arith.constant 0 : i32
    %c0_i32_1 = arith.constant 0 : i32
    return %c0_i32, %c0_i32_0 : i32, i32
  }
  func.func @transform_11(%arg0: i32) -> (i32, i32) {
    %c0_i32 = arith.constant 0 : i32
    %c0_i32_0 = arith.constant 0 : i32
    return %arg0, %c0_i32 : i32, i32
  }
}

</mosaic_0001>

<llo_original>
// kernel: tpu_custom_call.1
$region0: #{tpu_custom_call.1}
  #allocation0 [shape = 'u32[]', space=smem, size = 0x4, offset = 0x4, fixed_abs, tag = 'smem constant byte address 0x4 - core index']
  #allocation1 [shape = 'u32[144,128]{1,0:T(1,128)}', space=vmem, size = 0x12000, scoped, tag = 'internal scratch']
  %s0 = inlined_call_operand.hbm [shape: bf16[8,128], index: 0, kind: input, shape index: {}]
  %s1 = inlined_call_operand.hbm [shape: bf16[128,256], index: 1, kind: input, shape index: {}]
  %s2 = inlined_call_operand.hbm [shape: f32[1,256], index: 2, kind: input, shape index: {}]
  %s3 = inlined_call_operand.hbm [shape: bf16[256,384], index: 3, kind: input, shape index: {}]
  %s4 = inlined_call_operand.vmem [shape: f32[1,384], index: 4, kind: input, shape index: {}]
  %s5 = inlined_call_operand.hbm [shape: bf16[384,512], index: 5, kind: input, shape index: {}]
  %s6 = inlined_call_operand.vmem [shape: f32[1,512], index: 6, kind: input, shape index: {}]
  %s7 = inlined_call_operand.hbm [shape: bf16[512,512], index: 7, kind: input, shape index: {}]
  %s8 = inlined_call_operand.vmem [shape: f32[1,512], index: 8, kind: input, shape index: {}]
  %s9 = inlined_call_operand.hbm [shape: bf16[512,128], index: 9, kind: input, shape index: {}]
  %s10 = inlined_call_operand.vmem [shape: f32[1,128], index: 10, kind: input, shape index: {}]
  %s11 = inlined_call_operand.hbm [shape: f32[8,128], index: 11, kind: output, shape index: {}]
  %s12 = sld [smem:[#allocation0]]
  $region82: #{tpu_custom_call.1} parent=0
    _
  %s14 = ssub.s32 1, %s12
  %s15 = scalar_select 0, %s14, %s12
  $region1: #{tpu_custom_call.1} parent=0
    #allocation2 [shape = 'u8[2048]{0}', space=vmem, size = 0x800, scoped, tag = 'input window, operand 0, single buffered']
    #allocation3 [shape = 's32[1]{0}', space=sflag, size = 0x4, scoped, tag = 'scoped memory for tpu_custom_call.1']
    #allocation4 [shape = 's32[1]{0}', space=sflag, size = 0x4, scoped, tag = 'scoped memory for tpu_custom_call.1']
    #allocation5 [shape = 'u8[65536]{0}', space=vmem, size = 0x10000, scoped, tag = 'input window, operand 1, single buffered']
    #allocation6 [shape = 's32[1]{0}', space=sflag, size = 0x4, scoped, tag = 'scoped memory for tpu_custom_call.1']
    #allocation7 [shape = 'u8[1024]{0}', space=vmem, size = 0x400, scoped, tag = 'input window, operand 2, single buffered']
    #allocation8 [shape = 'u8[196608]{0}', space=vmem, size = 0x30000, scoped, tag = 'input window, operand 3, single buffered']
    #allocation9 [shape = 's32[1]{0}', space=sflag, size = 0x4, scoped, tag = 'scoped memory for tpu_custom_call.1']
    #allocation10 [shape = 'u8[393216]{0}', space=vmem, size = 0x60000, scoped, tag = 'input window, operand 5, single buffered']
    #allocation11 [shape = 'u8[524288]{0}', space=vmem, size = 0x80000, scoped, tag = 'input window, operand 7, single buffered']
    #allocation12 [shape = 's32[1]{0}', space=sflag, size = 0x4, scoped, tag = 'scoped memory for tpu_custom_call.1']
    #allocation13 [shape = 'u8[131072]{0}', space=vmem, size = 0x20000, scoped, tag = 'input window, operand 9, single buffered']
    #allocation14 [shape = 'u8[4096]{0}', space=vmem, size = 0x1000, scoped, tag = 'output window, operand 0, single buffered']
    %16 = vsyncpa [#allocation3], 0
    %17 = vsyncpa [#allocation6], 0
    %18 = vsyncpa [#allocation9], 0
    %19 = vsyncpa [#allocation12], 0
    %20 = vsyncpa [#allocation4], 0
    // Predicated region
    $region2: #{tpu_custom_call.1} parent=1 // pred_check
      _
    $region3: #{tpu_custom_call.1} parent=1 // pred_check_branch
      %22 = sbr.rel (0) target = $region5
    $region4: #{tpu_custom_call.1} parent=1 // pred_region
      %s24 = ssub.s32 64, 64
      %25 = vsyncadd [#allocation3], %s24
      %s27 = sshll.u32 [#allocation2], 4
      %s28 = int_to_ptr.vmem [resolvable:$true] %s27
      %30 = dma.hbm_to_vmem [thread:$0]  %s0, 64, %s28, [#allocation3]
    $region5: #{tpu_custom_call.1} parent=1 // pred_fallthru
      _
    // Predicated region
    $region6: #{tpu_custom_call.1} parent=1 // pred_check
      _
    $region7: #{tpu_custom_call.1} parent=1 // pred_check_branch
      %32 = sbr.rel (0) target = $region9
    $region8: #{tpu_custom_call.1} parent=1 // pred_region
      %s34 = ssub.s32 2048, 2048
      %35 = vsyncadd [#allocation6], %s34
      %s36 = sshll.u32 [#allocation5], 4
      %s37 = int_to_ptr.vmem [resolvable:$true] %s36
      %42 = dma.hbm_to_vmem [thread:$0]  %s1, 2048, %s37, [#allocation6], 128, 128, 8
    $region9: #{tpu_custom_call.1} parent=1 // pred_fallthru
      _
    // Predicated region
    $region10: #{tpu_custom_call.1} parent=1 // pred_check
      _
    $region11: #{tpu_custom_call.1} parent=1 // pred_check_branch
      %44 = sbr.rel (0) target = $region13
    $region12: #{tpu_custom_call.1} parent=1 // pred_region
      %s46 = ssub.s32 32, 32
      %47 = vsyncadd [#allocation6], %s46
      %s49 = sshll.u32 [#allocation7], 4
      %s50 = int_to_ptr.vmem [resolvable:$true] %s49
      %52 = dma.hbm_to_vmem [thread:$0]  %s2, 32, %s50, [#allocation6]
    $region13: #{tpu_custom_call.1} parent=1 // pred_fallthru
      _
    // Predicated region
    $region14: #{tpu_custom_call.1} parent=1 // pred_check
      _
    $region15: #{tpu_custom_call.1} parent=1 // pred_check_branch
      %54 = sbr.rel (0) target = $region17
    $region16: #{tpu_custom_call.1} parent=1 // pred_region
      %s56 = ssub.s32 6144, 6144
      %57 = vsyncadd [#allocation9], %s56
      %s58 = sshll.u32 [#allocation8], 4
      %s59 = int_to_ptr.vmem [resolvable:$true] %s58
      %64 = dma.hbm_to_vmem [thread:$0]  %s3, 6144, %s59, [#allocation9], 192, 192, 12
    $region17: #{tpu_custom_call.1} parent=1 // pred_fallthru
      _
    // Predicated region
    $region18: #{tpu_custom_call.1} parent=1 // pred_check
      _
    $region19: #{tpu_custom_call.1} parent=1 // pred_check_branch
      %66 = sbr.rel (0) target = $region21
    $region20: #{tpu_custom_call.1} parent=1 // pred_region
      _
    $region21: #{tpu_custom_call.1} parent=1 // pred_fallthru
      _
    // Predicated region
    $region22: #{tpu_custom_call.1} parent=1 // pred_check
      _
    $region23: #{tpu_custom_call.1} parent=1 // pred_check_branch
      %68 = sbr.rel (0) target = $region25
    $region24: #{tpu_custom_call.1} parent=1 // pred_region
      %s70 = ssub.s32 12288, 12288
      %71 = vsyncadd [#allocation9], %s70
      %s72 = sshll.u32 [#allocation10], 4
      %s73 = int_to_ptr.vmem [resolvable:$true] %s72
      %78 = dma.hbm_to_vmem [thread:$0]  %s5, 12288, %s73, [#allocation9], 256, 256, 16
    $region25: #{tpu_custom_call.1} parent=1 // pred_fallthru
      _
    // Predicated region
    $region26: #{tpu_custom_call.1} parent=1 // pred_check
      _
    $region27: #{tpu_custom_call.1} parent=1 // pred_check_branch
      %80 = sbr.rel (0) target = $region29
    $region28: #{tpu_custom_call.1} parent=1 // pred_region
      _
    $region29: #{tpu_custom_call.1} parent=1 // pred_fallthru
      _
    // Predicated region
    $region30: #{tpu_custom_call.1} parent=1 // pred_check
      _
    $region31: #{tpu_custom_call.1} parent=1 // pred_check_branch
      %82 = sbr.rel (0) target = $region33
    $region32: #{tpu_custom_call.1} parent=1 // pred_region
      %s84 = ssub.s32 16384, 16384
      %85 = vsyncadd [#allocation12], %s84
      %s86 = sshll.u32 [#allocation11], 4
      %s87 = int_to_ptr.vmem [resolvable:$true] %s86
      %92 = dma.hbm_to_vmem [thread:$0]  %s7, 16384, %s87, [#allocation12], 256, 256, 16
    $region33: #{tpu_custom_call.1} parent=1 // pred_fallthru
      _
    // Predicated region
    $region34: #{tpu_custom_call.1} parent=1 // pred_check
      _
    $region35: #{tpu_custom_call.1} parent=1 // pred_check_branch
      %94 = sbr.rel (0) target = $region37
    $region36: #{tpu_custom_call.1} parent=1 // pred_region
      _
    $region37: #{tpu_custom_call.1} parent=1 // pred_fallthru
      _
    // Predicated region
    $region38: #{tpu_custom_call.1} parent=1 // pred_check
      _
    $region39: #{tpu_custom_call.1} parent=1 // pred_check_branch
      %96 = sbr.rel (0) target = $region41
    $region40: #{tpu_custom_call.1} parent=1 // pred_region
      %s98 = ssub.s32 4096, 4096
      %99 = vsyncadd [#allocation12], %s98
      %s100 = sshll.u32 [#allocation13], 4
      %s101 = int_to_ptr.vmem [resolvable:$true] %s100
      %106 = dma.hbm_to_vmem [thread:$0]  %s9, 4096, %s101, [#allocation12], 64, 64, 4
    $region41: #{tpu_custom_call.1} parent=1 // pred_fallthru
      _
    // Predicated region
    $region42: #{tpu_custom_call.1} parent=1 // pred_check
      _
    $region43: #{tpu_custom_call.1} parent=1 // pred_check_branch
      %108 = sbr.rel (0) target = $region45
    $region44: #{tpu_custom_call.1} parent=1 // pred_region
      _
    $region45: #{tpu_custom_call.1} parent=1 // pred_fallthru
      _
    // Predicated region
    $region46: #{tpu_custom_call.1} parent=1 // pred_check
      _
    $region47: #{tpu_custom_call.1} parent=1 // pred_check_branch
      %110 = sbr.rel (0) target = $region49
    $region48: #{tpu_custom_call.1} parent=1 // pred_region
      %111 = dma.done [#allocation3], 64
    $region49: #{tpu_custom_call.1} parent=1 // pred_fallthru
      _
    // Predicated region
    $region50: #{tpu_custom_call.1} parent=1 // pred_check
      _
    $region51: #{tpu_custom_call.1} parent=1 // pred_check_branch
      %113 = sbr.rel (0) target = $region53
    $region52: #{tpu_custom_call.1} parent=1 // pred_region
      %114 = dma.done [#allocation6], 2048
    $region53: #{tpu_custom_call.1} parent=1 // pred_fallthru
      _
    // Predicated region
    $region54: #{tpu_custom_call.1} parent=1 // pred_check
      _
    $region55: #{tpu_custom_call.1} parent=1 // pred_check_branch
      %116 = sbr.rel (0) target = $region57
    $region56: #{tpu_custom_call.1} parent=1 // pred_region
      %117 = dma.done [#allocation6], 32
    $region57: #{tpu_custom_call.1} parent=1 // pred_fallthru
      _
    // Predicated region
    $region58: #{tpu_custom_call.1} parent=1 // pred_check
      _
    $region59: #{tpu_custom_call.1} parent=1 // pred_check_branch
      %119 = sbr.rel (0) target = $region61
    $region60: #{tpu_custom_call.1} parent=1 // pred_region
      %120 = dma.done [#allocation9], 6144
    $region61: #{tpu_custom_call.1} parent=1 // pred_fallthru
      _
    // Predicated region
    $region62: #{tpu_custom_call.1} parent=1 // pred_check
      _
    $region63: #{tpu_custom_call.1} parent=1 // pred_check_branch
      %122 = sbr.rel (0) target = $region65
    $region64: #{tpu_custom_call.1} parent=1 // pred_region
      %123 = dma.done [#allocation9], 12288
    $region65: #{tpu_custom_call.1} parent=1 // pred_fallthru
      _
    // Predicated region
    $region66: #{tpu_custom_call.1} parent=1 // pred_check
      _
    $region67: #{tpu_custom_call.1} parent=1 // pred_check_branch
      %125 = sbr.rel (0) target = $region69
    $region68: #{tpu_custom_call.1} parent=1 // pred_region
      %126 = dma.done [#allocation12], 16384
    $region69: #{tpu_custom_call.1} parent=1 // pred_fallthru
      _
    // Predicated region
    $region70: #{tpu_custom_call.1} parent=1 // pred_check
      _
    $region71: #{tpu_custom_call.1} parent=1 // pred_check_branch
      %128 = sbr.rel (0) target = $region73
    $region72: #{tpu_custom_call.1} parent=1 // pred_region
      %129 = dma.done [#allocation12], 4096
    $region73: #{tpu_custom_call.1} parent=1 // pred_fallthru
      _
    %v131 = vld [vmem:[#allocation2] sm:$0xf]
    %v132 = vld [vmem:[#allocation5] sm:$0xff]
    %v133 = vld [vmem:[#allocation5 + $0x8] sm:$0xff]
    %v134 = vld [vmem:[#allocation5 + $0x10] sm:$0xff]
    %v135 = vld [vmem:[#allocation5 + $0x18] sm:$0xff]
    %v136 = vld [vmem:[#allocation5 + $0x20] sm:$0xff]
    %v137 = vld [vmem:[#allocation5 + $0x28] sm:$0xff]
    %v138 = vld [vmem:[#allocation5 + $0x30] sm:$0xff]
    %v139 = vld [vmem:[#allocation5 + $0x38] sm:$0xff]
    %v140 = vld [vmem:[#allocation5 + $0x40] sm:$0xff]
    %v141 = vld [vmem:[#allocation5 + $0x48] sm:$0xff]
    %v142 = vld [vmem:[#allocation5 + $0x50] sm:$0xff]
    %v143 = vld [vmem:[#allocation5 + $0x58] sm:$0xff]
    %v144 = vld [vmem:[#allocation5 + $0x60] sm:$0xff]
    %v145 = vld [vmem:[#allocation5 + $0x68] sm:$0xff]
    %v146 = vld [vmem:[#allocation5 + $0x70] sm:$0xff]
    %v147 = vld [vmem:[#allocation5 + $0x78] sm:$0xff]
    %v148 = vld [vmem:[#allocation7] sm:$0x3]
    %v150 = vlaneseq
    %v151 = vshrl.u32 %v150, 7
    %v152 = vsub.s32 0, %v151
    %v153 = vrot.slane %v148, %v152
    %v154 = vlaneseq
    %v155 = vshrl.u32 %v154, 7
    %v156 = vsub.s32 1, %v155
    %v157 = vrot.slane %v148, %v156
    %v176 = vunpack.c.l.b16 %v132
    %v177 = vunpack.c.h.b16 %v132
    %v178 = vunpack.c.l.b16 %v133
    %v179 = vunpack.c.h.b16 %v133
    %v180 = vunpack.c.l.b16 %v134
    %v181 = vunpack.c.h.b16 %v134
    %v182 = vunpack.c.l.b16 %v135
    %v183 = vunpack.c.h.b16 %v135
    %v184 = vunpack.c.l.b16 %v136
    %v185 = vunpack.c.h.b16 %v136
    %v186 = vunpack.c.l.b16 %v137
    %v187 = vunpack.c.h.b16 %v137
    %v188 = vunpack.c.l.b16 %v138
    %v189 = vunpack.c.h.b16 %v138
    %v190 = vunpack.c.l.b16 %v139
    %v191 = vunpack.c.h.b16 %v139
    %v192 = vunpack.c.l.b16 %v140
    %v193 = vunpack.c.h.b16 %v140
    %v194 = vunpack.c.l.b16 %v141
    %v195 = vunpack.c.h.b16 %v141
    %v196 = vunpack.c.l.b16 %v142
    %v197 = vunpack.c.h.b16 %v142
    %v198 = vunpack.c.l.b16 %v143
    %v199 = vunpack.c.h.b16 %v143
    %v200 = vunpack.c.l.b16 %v144
    %v201 = vunpack.c.h.b16 %v144
    %v202 = vunpack.c.l.b16 %v145
    %v203 = vunpack.c.h.b16 %v145
    %v204 = vunpack.c.l.b16 %v146
    %v205 = vunpack.c.h.b16 %v146
    %v206 = vunpack.c.l.b16 %v147
    %v207 = vunpack.c.h.b16 %v147
    %v208 = vpack.c.b16 %v178, %v176
    %v209 = vpack.c.b16 %v179, %v177
    %v210 = vpack.c.b16 %v182, %v180
    %v211 = vpack.c.b16 %v183, %v181
    %v212 = vpack.c.b16 %v186, %v184
    %v213 = vpack.c.b16 %v187, %v185
    %v214 = vpack.c.b16 %v190, %v188
    %v215 = vpack.c.b16 %v191, %v189
    %v216 = vpack.c.b16 %v194, %v192
    %v217 = vpack.c.b16 %v195, %v193
    %v218 = vpack.c.b16 %v198, %v196
    %v219 = vpack.c.b16 %v199, %v197
    %v220 = vpack.c.b16 %v202, %v200
    %v221 = vpack.c.b16 %v203, %v201
    %v222 = vpack.c.b16 %v206, %v204
    %v223 = vpack.c.b16 %v207, %v205
    %240 = vmatprep.subr.bf16.mxu0 %v209
    %241 = vmatpush1.bf16.msra.mxu0 %v208
    %242 = vmatprep.subr.bf16.mxu0 %v211
    %243 = vmatpush1.bf16.msra.mxu0 %v210
    %244 = vmatprep.subr.bf16.mxu0 %v213
    %245 = vmatpush1.bf16.msra.mxu0 %v212
    %246 = vmatprep.subr.bf16.mxu0 %v215
    %247 = vmatpush1.bf16.msra.mxu0 %v214
    %248 = vmatprep.subr.bf16.mxu0 %v217
    %249 = vmatpush1.bf16.msra.mxu0 %v216
    %250 = vmatprep.subr.bf16.mxu0 %v219
    %251 = vmatpush1.bf16.msra.mxu0 %v218
    %252 = vmatprep.subr.bf16.mxu0 %v221
    %253 = vmatpush1.bf16.msra.mxu0 %v220
    %254 = vmatprep.subr.bf16.mxu0 %v223
    %255 = vmatpush1.bf16.msra.mxu0 %v222
    %256 = vmatprep.subr.bf16.mxu0 0
    %257 = vmatpush1.bf16.msra.mxu0 0
    %258 = vmatprep.subr.bf16.mxu0 0
    %259 = vmatpush1.bf16.msra.mxu0 0
    %260 = vmatprep.subr.bf16.mxu0 0
    %261 = vmatpush1.bf16.msra.mxu0 0
    %262 = vmatprep.subr.bf16.mxu0 0
    %263 = vmatpush1.bf16.msra.mxu0 0
    %264 = vmatprep.subr.bf16.mxu0 0
    %265 = vmatpush1.bf16.msra.mxu0 0
    %266 = vmatprep.subr.bf16.mxu0 0
    %267 = vmatpush1.bf16.msra.mxu0 0
    %268 = vmatprep.subr.bf16.mxu0 0
    %269 = vmatpush1.bf16.msra.mxu0 0
    %270 = vmatprep.subr.bf16.mxu0 0
    %271 = vmatpush1.bf16.msra.mxu0 0
    %272 = vmatprep.mubr.bf16.mxu0 0
    %273 = vmatmul.mubr.bf16.gmra.mrb[0].mxu0 %v131
    %v274 = vpop.f32.mrb[0].mxu0
    %v275 = vadd.f32 %v153, %v274
    %v276 = vpop.f32.mrb[0].mxu0
    %v277 = vadd.f32 %v157, %v276
    %v278 = vpop.f32.mrb[0].mxu0
    %v279 = vpop.f32.mrb[0].mxu0
    %280 = vdwg.mxu0
    %v281 = vmax.f32 %v275, 0.0
    %v282 = vmax.f32 %v277, 0.0
    %v283 = vpack.c.bf16 %v281, %v281
    %v284 = vpack.c.bf16 %v282, %v282
    %v285 = vld [vmem:[#allocation8] sm:$0xff]
    %v286 = vld [vmem:[#allocation8 + $0x8] sm:$0xf]
    %v287 = vld [vmem:[#allocation8 + $0xc] sm:$0xff]
    %v288 = vld [vmem:[#allocation8 + $0x14] sm:$0xf]
    %v289 = vld [vmem:[#allocation8 + $0x18] sm:$0xff]
    %v290 = vld [vmem:[#allocation8 + $0x20] sm:$0xf]
    %v291 = vld [vmem:[#allocation8 + $0x24] sm:$0xff]
    %v292 = vld [vmem:[#allocation8 + $0x2c] sm:$0xf]
    %v293 = vld [vmem:[#allocation8 + $0x30] sm:$0xff]
    %v294 = vld [vmem:[#allocation8 + $0x38] sm:$0xf]
    %v295 = vld [vmem:[#allocation8 + $0x3c] sm:$0xff]
    %v296 = vld [vmem:[#allocation8 + $0x44] sm:$0xf]
    %v297 = vld [vmem:[#allocation8 + $0x48] sm:$0xff]
    %v298 = vld [vmem:[#allocation8 + $0x50] sm:$0xf]
    %v299 = vld [vmem:[#allocation8 + $0x54] sm:$0xff]
    %v300 = vld [vmem:[#allocation8 + $0x5c] sm:$0xf]
    %v301 = vld [vmem:[#allocation8 + $0x60] sm:$0xff]
    %v302 = vld [vmem:[#allocation8 + $0x68] sm:$0xf]
    %v303 = vld [vmem:[#allocation8 + $0x6c] sm:$0xff]
    %v304 = vld [vmem:[#allocation8 + $0x74] sm:$0xf]
    %v305 = vld [vmem:[#allocation8 + $0x78] sm:$0xff]
    %v306 = vld [vmem:[#allocation8 + $0x80] sm:$0xf]
    %v307 = vld [vmem:[#allocation8 + $0x84] sm:$0xff]
    %v308 = vld [vmem:[#allocation8 + $0x8c] sm:$0xf]
    %v309 = vld [vmem:[#allocation8 + $0x90] sm:$0xff]
    %v310 = vld [vmem:[#allocation8 + $0x98] sm:$0xf]
    %v311 = vld [vmem:[#allocation8 + $0x9c] sm:$0xff]
    %v312 = vld [vmem:[#allocation8 + $0xa4] sm:$0xf]
    %v313 = vld [vmem:[#allocation8 + $0xa8] sm:$0xff]
    %v314 = vld [vmem:[#allocation8 + $0xb0] sm:$0xf]
    %v315 = vld [vmem:[#allocation8 + $0xb4] sm:$0xff]
    %v316 = vld [vmem:[#allocation8 + $0xbc] sm:$0xf]
    %v317 = vld [vmem:[#allocation8 + $0xc0] sm:$0xff]
    %v318 = vld [vmem:[#allocation8 + $0xc8] sm:$0xf]
    %v319 = vld [vmem:[#allocation8 + $0xcc] sm:$0xff]
    %v320 = vld [vmem:[#allocation8 + $0xd4] sm:$0xf]
    %v321 = vld [vmem:[#allocation8 + $0xd8] sm:$0xff]
    %v322 = vld [vmem:[#allocation8 + $0xe0] sm:$0xf]
    %v323 = vld [vmem:[#allocation8 + $0xe4] sm:$0xff]
    %v324 = vld [vmem:[#allocation8 + $0xec] sm:$0xf]
    %v325 = vld [vmem:[#allocation8 + $0xf0] sm:$0xff]
    %v326 = vld [vmem:[#allocation8 + $0xf8] sm:$0xf]
    %v327 = vld [vmem:[#allocation8 + $0xfc] sm:$0xff]
    %v328 = vld [vmem:[#allocation8 + $0x104] sm:$0xf]
    %v329 = vld [vmem:[#allocation8 + $0x108] sm:$0xff]
    %v330 = vld [vmem:[#allocation8 + $0x110] sm:$0xf]
    %v331 = vld [vmem:[#allocation8 + $0x114] sm:$0xff]
    %v332 = vld [vmem:[#allocation8 + $0x11c] sm:$0xf]
    %v333 = vld [vmem:[#allocation8 + $0x120] sm:$0xff]
    %v334 = vld [vmem:[#allocation8 + $0x128] sm:$0xf]
    %v335 = vld [vmem:[#allocation8 + $0x12c] sm:$0xff]
    %v336 = vld [vmem:[#allocation8 + $0x134] sm:$0xf]
    %v337 = vld [vmem:[#allocation8 + $0x138] sm:$0xff]
    %v338 = vld [vmem:[#allocation8 + $0x140] sm:$0xf]
    %v339 = vld [vmem:[#allocation8 + $0x144] sm:$0xff]
    %v340 = vld [vmem:[#allocation8 + $0x14c] sm:$0xf]
    %v341 = vld [vmem:[#allocation8 + $0x150] sm:$0xff]
    %v342 = vld [vmem:[#allocation8 + $0x158] sm:$0xf]
    %v343 = vld [vmem:[#allocation8 + $0x15c] sm:$0xff]
    %v344 = vld [vmem:[#allocation8 + $0x164] sm:$0xf]
    %v345 = vld [vmem:[#allocation8 + $0x168] sm:$0xff]
    %v346 = vld [vmem:[#allocation8 + $0x170] sm:$0xf]
    %v347 = vld [vmem:[#allocation8 + $0x174] sm:$0xff]
    %v348 = vld [vmem:[#allocation8 + $0x17c] sm:$0xf]
    %v349 = vld [vmem:[%s4] sm:$0x7]
    %v351 = vlaneseq
    %v352 = vshrl.u32 %v351, 7
    %v353 = vsub.s32 0, %v352
    %v354 = vrot.slane %v349, %v353
    %v355 = vlaneseq
    %v356 = vshrl.u32 %v355, 7
    %v357 = vsub.s32 1, %v356
    %v358 = vrot.slane %v349, %v357
    %v359 = vlaneseq
    %v360 = vshrl.u32 %v359, 7
    %v361 = vsub.s32 2, %v360
    %v362 = vrot.slane %v349, %v361
    %v430 = vunpack.c.l.b16 %v285
    %v431 = vunpack.c.h.b16 %v285
    %v432 = vunpack.c.l.b16 %v286
    %v433 = vunpack.c.l.b16 %v287
    %v434 = vunpack.c.h.b16 %v287
    %v435 = vunpack.c.l.b16 %v288
    %v436 = vunpack.c.l.b16 %v289
    %v437 = vunpack.c.h.b16 %v289
    %v438 = vunpack.c.l.b16 %v290
    %v439 = vunpack.c.l.b16 %v291
    %v440 = vunpack.c.h.b16 %v291
    %v441 = vunpack.c.l.b16 %v292
    %v442 = vunpack.c.l.b16 %v293
    %v443 = vunpack.c.h.b16 %v293
    %v444 = vunpack.c.l.b16 %v294
    %v445 = vunpack.c.l.b16 %v295
    %v446 = vunpack.c.h.b16 %v295
    %v447 = vunpack.c.l.b16 %v296
    %v448 = vunpack.c.l.b16 %v297
    %v449 = vunpack.c.h.b16 %v297
    %v450 = vunpack.c.l.b16 %v298
    %v451 = vunpack.c.l.b16 %v299
    %v452 = vunpack.c.h.b16 %v299
    %v453 = vunpack.c.l.b16 %v300
    %v454 = vunpack.c.l.b16 %v301
    %v455 = vunpack.c.h.b16 %v301
    %v456 = vunpack.c.l.b16 %v302
    %v457 = vunpack.c.l.b16 %v303
    %v458 = vunpack.c.h.b16 %v303
    %v459 = vunpack.c.l.b16 %v304
    %v460 = vunpack.c.l.b16 %v305
    %v461 = vunpack.c.h.b16 %v305
    %v462 = vunpack.c.l.b16 %v306
    %v463 = vunpack.c.l.b16 %v307
    %v464 = vunpack.c.h.b16 %v307
    %v465 = vunpack.c.l.b16 %v308
    %v466 = vunpack.c.l.b16 %v309
    %v467 = vunpack.c.h.b16 %v309
    %v468 = vunpack.c.l.b16 %v310
    %v469 = vunpack.c.l.b16 %v311
    %v470 = vunpack.c.h.b16 %v311
    %v471 = vunpack.c.l.b16 %v312
    %v472 = vunpack.c.l.b16 %v313
    %v473 = vunpack.c.h.b16 %v313
    %v474 = vunpack.c.l.b16 %v314
    %v475 = vunpack.c.l.b16 %v315
    %v476 = vunpack.c.h.b16 %v315
    %v477 = vunpack.c.l.b16 %v316
    %v478 = vunpack.c.l.b16 %v317
    %v479 = vunpack.c.h.b16 %v317
    %v480 = vunpack.c.l.b16 %v318
    %v481 = vunpack.c.l.b16 %v319
    %v482 = vunpack.c.h.b16 %v319
    %v483 = vunpack.c.l.b16 %v320
    %v484 = vunpack.c.l.b16 %v321
    %v485 = vunpack.c.h.b16 %v321
    %v486 = vunpack.c.l.b16 %v322
    %v487 = vunpack.c.l.b16 %v323
    %v488 = vunpack.c.h.b16 %v323
    %v489 = vunpack.c.l.b16 %v324
    %v490 = vunpack.c.l.b16 %v325
    %v491 = vunpack.c.h.b16 %v325
    %v492 = vunpack.c.l.b16 %v326
    %v493 = vunpack.c.l.b16 %v327
    %v494 = vunpack.c.h.b16 %v327
    %v495 = vunpack.c.l.b16 %v328
    %v496 = vunpack.c.l.b16 %v329
    %v497 = vunpack.c.h.b16 %v329
    %v498 = vunpack.c.l.b16 %v330
    %v499 = vunpack.c.l.b16 %v331
    %v500 = vunpack.c.h.b16 %v331
    %v501 = vunpack.c.l.b16 %v332
    %v502 = vunpack.c.l.b16 %v333
    %v503 = vunpack.c.h.b16 %v333
    %v504 = vunpack.c.l.b16 %v334
    %v505 = vunpack.c.l.b16 %v335
    %v506 = vunpack.c.h.b16 %v335
    %v507 = vunpack.c.l.b16 %v336
    %v508 = vunpack.c.l.b16 %v337
    %v509 = vunpack.c.h.b16 %v337
    %v510 = vunpack.c.l.b16 %v338
    %v511 = vunpack.c.l.b16 %v339
    %v512 = vunpack.c.h.b16 %v339
    %v513 = vunpack.c.l.b16 %v340
    %v514 = vunpack.c.l.b16 %v341
    %v515 = vunpack.c.h.b16 %v341
    %v516 = vunpack.c.l.b16 %v342
    %v517 = vunpack.c.l.b16 %v343
    %v518 = vunpack.c.h.b16 %v343
    %v519 = vunpack.c.l.b16 %v344
    %v520 = vunpack.c.l.b16 %v345
    %v521 = vunpack.c.h.b16 %v345
    %v522 = vunpack.c.l.b16 %v346
    %v523 = vunpack.c.l.b16 %v347
    %v524 = vunpack.c.h.b16 %v347
    %v525 = vunpack.c.l.b16 %v348
    %v526 = vpack.c.b16 %v433, %v430
    %v527 = vpack.c.b16 %v434, %v431
    %v528 = vpack.c.b16 %v435, %v432
    %v529 = vpack.c.b16 %v439, %v436
    %v530 = vpack.c.b16 %v440, %v437
    %v531 = vpack.c.b16 %v441, %v438
    %v532 = vpack.c.b16 %v445, %v442
    %v533 = vpack.c.b16 %v446, %v443
    %v534 = vpack.c.b16 %v447, %v444
    %v535 = vpack.c.b16 %v451, %v448
    %v536 = vpack.c.b16 %v452, %v449
    %v537 = vpack.c.b16 %v453, %v450
    %v538 = vpack.c.b16 %v457, %v454
    %v539 = vpack.c.b16 %v458, %v455
    %v540 = vpack.c.b16 %v459, %v456
    %v541 = vpack.c.b16 %v463, %v460
    %v542 = vpack.c.b16 %v464, %v461
    %v543 = vpack.c.b16 %v465, %v462
    %v544 = vpack.c.b16 %v469, %v466
    %v545 = vpack.c.b16 %v470, %v467
    %v546 = vpack.c.b16 %v471, %v468
    %v547 = vpack.c.b16 %v475, %v472
    %v548 = vpack.c.b16 %v476, %v473
    %v549 = vpack.c.b16 %v477, %v474
    %v550 = vpack.c.b16 %v481, %v478
    %v551 = vpack.c.b16 %v482, %v479
    %v552 = vpack.c.b16 %v483, %v480
    %v553 = vpack.c.b16 %v487, %v484
    %v554 = vpack.c.b16 %v488, %v485
    %v555 = vpack.c.b16 %v489, %v486
    %v556 = vpack.c.b16 %v493, %v490
    %v557 = vpack.c.b16 %v494, %v491
    %v558 = vpack.c.b16 %v495, %v492
    %v559 = vpack.c.b16 %v499, %v496
    %v560 = vpack.c.b16 %v500, %v497
    %v561 = vpack.c.b16 %v501, %v498
    %v562 = vpack.c.b16 %v505, %v502
    %v563 = vpack.c.b16 %v506, %v503
    %v564 = vpack.c.b16 %v507, %v504
    %v565 = vpack.c.b16 %v511, %v508
    %v566 = vpack.c.b16 %v512, %v509
    %v567 = vpack.c.b16 %v513, %v510
    %v568 = vpack.c.b16 %v517, %v514
    %v569 = vpack.c.b16 %v518, %v515
    %v570 = vpack.c.b16 %v519, %v516
    %v571 = vpack.c.b16 %v523, %v520
    %v572 = vpack.c.b16 %v524, %v521
    %v573 = vpack.c.b16 %v525, %v522
    %622 = vmatprep.subr.bf16.mxu0 %v527
    %623 = vmatpush1.bf16.msra.mxu0 %v526
    %624 = vmatprep.subr.bf16.mxu0 %v530
    %625 = vmatpush1.bf16.msra.mxu0 %v529
    %626 = vmatprep.subr.bf16.mxu0 %v533
    %627 = vmatpush1.bf16.msra.mxu0 %v532
    %628 = vmatprep.subr.bf16.mxu0 %v536
    %629 = vmatpush1.bf16.msra.mxu0 %v535
    %630 = vmatprep.subr.bf16.mxu0 %v539
    %631 = vmatpush1.bf16.msra.mxu0 %v538
    %632 = vmatprep.subr.bf16.mxu0 %v542
    %633 = vmatpush1.bf16.msra.mxu0 %v541
    %634 = vmatprep.subr.bf16.mxu0 %v545
    %635 = vmatpush1.bf16.msra.mxu0 %v544
    %636 = vmatprep.subr.bf16.mxu0 %v548
    %637 = vmatpush1.bf16.msra.mxu0 %v547
    %638 = vmatprep.subr.bf16.mxu0 %v551
    %639 = vmatpush1.bf16.msra.mxu0 %v550
    %640 = vmatprep.subr.bf16.mxu0 %v554
    %641 = vmatpush1.bf16.msra.mxu0 %v553
    %642 = vmatprep.subr.bf16.mxu0 %v557
    %643 = vmatpush1.bf16.msra.mxu0 %v556
    %644 = vmatprep.subr.bf16.mxu0 %v560
    %645 = vmatpush1.bf16.msra.mxu0 %v559
    %646 = vmatprep.subr.bf16.mxu0 %v563
    %647 = vmatpush1.bf16.msra.mxu0 %v562
    %648 = vmatprep.subr.bf16.mxu0 %v566
    %649 = vmatpush1.bf16.msra.mxu0 %v565
    %650 = vmatprep.subr.bf16.mxu0 %v569
    %651 = vmatpush1.bf16.msra.mxu0 %v568
    %652 = vmatprep.subr.bf16.mxu0 %v572
    %653 = vmatpush1.bf16.msra.mxu0 %v571
    %654 = vmatprep.mubr.bf16.mxu0 %v284
    %655 = vmatmul.mubr.bf16.gmra.mrb[0].mxu0 %v283
    %v656 = vpop.f32.mrb[0].mxu0
    %v657 = vadd.f32 %v354, %v656
    %v658 = vpop.f32.mrb[0].mxu0
    %v659 = vadd.f32 %v358, %v658
    %v660 = vpop.f32.mrb[0].mxu0
    %v661 = vpop.f32.mrb[0].mxu0
    %662 = vdwg.mxu0
    %663 = vmatprep.subr.bf16.mxu0 0
    %664 = vmatpush1.bf16.msra.mxu0 %v528
    %665 = vmatprep.subr.bf16.mxu0 0
    %666 = vmatpush1.bf16.msra.mxu0 %v531
    %667 = vmatprep.subr.bf16.mxu0 0
    %668 = vmatpush1.bf16.msra.mxu0 %v534
    %669 = vmatprep.subr.bf16.mxu0 0
    %670 = vmatpush1.bf16.msra.mxu0 %v537
    %671 = vmatprep.subr.bf16.mxu0 0
    %672 = vmatpush1.bf16.msra.mxu0 %v540
    %673 = vmatprep.subr.bf16.mxu0 0
    %674 = vmatpush1.bf16.msra.mxu0 %v543
    %675 = vmatprep.subr.bf16.mxu0 0
    %676 = vmatpush1.bf16.msra.mxu0 %v546
    %677 = vmatprep.subr.bf16.mxu0 0
    %678 = vmatpush1.bf16.msra.mxu0 %v549
    %679 = vmatprep.subr.bf16.mxu0 0
    %680 = vmatpush1.bf16.msra.mxu0 %v552
    %681 = vmatprep.subr.bf16.mxu0 0
    %682 = vmatpush1.bf16.msra.mxu0 %v555
    %683 = vmatprep.subr.bf16.mxu0 0
    %684 = vmatpush1.bf16.msra.mxu0 %v558
    %685 = vmatprep.subr.bf16.mxu0 0
    %686 = vmatpush1.bf16.msra.mxu0 %v561
    %687 = vmatprep.subr.bf16.mxu0 0
    %688 = vmatpush1.bf16.msra.mxu0 %v564
    %689 = vmatprep.subr.bf16.mxu0 0
    %690 = vmatpush1.bf16.msra.mxu0 %v567
    %691 = vmatprep.subr.bf16.mxu0 0
    %692 = vmatpush1.bf16.msra.mxu0 %v570
    %693 = vmatprep.subr.bf16.mxu0 0
    %694 = vmatpush1.bf16.msra.mxu0 %v573
    %695 = vmatprep.mubr.bf16.mxu0 %v284
    %696 = vmatmul.mubr.bf16.gmra.mrb[0].mxu0 %v283
    %v697 = vpop.f32.mrb[0].mxu0
    %v698 = vadd.f32 %v362, %v697
    %v699 = vpop.f32.mrb[0].mxu0
    %v700 = vpop.f32.mrb[0].mxu0
    %v701 = vpop.f32.mrb[0].mxu0
    %702 = vdwg.mxu0
    %v703 = vmax.f32 %v657, 0.0
    %v704 = vmax.f32 %v659, 0.0
    %v705 = vmax.f32 %v698, 0.0
    %v706 = vpack.c.bf16 %v703, %v703
    %v707 = vpack.c.bf16 %v704, %v704
    %v708 = vpack.c.bf16 %v705, %v705
    %v709 = vld [vmem:[#allocation10] sm:$0xff]
    %v710 = vld [vmem:[#allocation10 + $0x8] sm:$0xff]
    %v711 = vld [vmem:[#allocation10 + $0x10] sm:$0xff]
    %v712 = vld [vmem:[#allocation10 + $0x18] sm:$0xff]
    %v713 = vld [vmem:[#allocation10 + $0x20] sm:$0xff]
    %v714 = vld [vmem:[#allocation10 + $0x28] sm:$0xff]
    %v715 = vld [vmem:[#allocation10 + $0x30] sm:$0xff]
    %v716 = vld [vmem:[#allocation10 + $0x38] sm:$0xff]
    %v717 = vld [vmem:[#allocation10 + $0x40] sm:$0xff]
    %v718 = vld [vmem:[#allocation10 + $0x48] sm:$0xff]
    %v719 = vld [vmem:[#allocation10 + $0x50] sm:$0xff]
    %v720 = vld [vmem:[#allocation10 + $0x58] sm:$0xff]
    %v721 = vld [vmem:[#allocation10 + $0x60] sm:$0xff]
    %v722 = vld [vmem:[#allocation10 + $0x68] sm:$0xff]
    %v723 = vld [vmem:[#allocation10 + $0x70] sm:$0xff]
    %v724 = vld [vmem:[#allocation10 + $0x78] sm:$0xff]
    %v725 = vld [vmem:[#allocation10 + $0x80] sm:$0xff]
    %v726 = vld [vmem:[#allocation10 + $0x88] sm:$0xff]
    %v727 = vld [vmem:[#allocation10 + $0x90] sm:$0xff]
    %v728 = vld [vmem:[#allocation10 + $0x98] sm:$0xff]
    %v729 = vld [vmem:[#allocation10 + $0xa0] sm:$0xff]
    %v730 = vld [vmem:[#allocation10 + $0xa8] sm:$0xff]
    %v731 = vld [vmem:[#allocation10 + $0xb0] sm:$0xff]
    %v732 = vld [vmem:[#allocation10 + $0xb8] sm:$0xff]
    %v733 = vld [vmem:[#allocation10 + $0xc0] sm:$0xff]
    %v734 = vld [vmem:[#allocation10 + $0xc8] sm:$0xff]
    %v735 = vld [vmem:[#allocation10 + $0xd0] sm:$0xff]
    %v736 = vld [vmem:[#allocation10 + $0xd8] sm:$0xff]
    %v737 = vld [vmem:[#allocation10 + $0xe0] sm:$0xff]
    %v738 = vld [vmem:[#allocation10 + $0xe8] sm:$0xff]
    %v739 = vld [vmem:[#allocation10 + $0xf0] sm:$0xff]
    %v740 = vld [vmem:[#allocation10 + $0xf8] sm:$0xff]
    %v741 = vld [vmem:[#allocation10 + $0x100] sm:$0xff]
    %v742 = vld [vmem:[#allocation10 + $0x108] sm:$0xff]
    %v743 = vld [vmem:[#allocation10 + $0x110] sm:$0xff]
    %v744 = vld [vmem:[#allocation10 + $0x118] sm:$0xff]
    %v745 = vld [vmem:[#allocation10 + $0x120] sm:$0xff]
    %v746 = vld [vmem:[#allocation10 + $0x128] sm:$0xff]
    %v747 = vld [vmem:[#allocation10 + $0x130] sm:$0xff]
    %v748 = vld [vmem:[#allocation10 + $0x138] sm:$0xff]
    %v749 = vld [vmem:[#allocation10 + $0x140] sm:$0xff]
    %v750 = vld [vmem:[#allocation10 + $0x148] sm:$0xff]
    %v751 = vld [vmem:[#allocation10 + $0x150] sm:$0xff]
    %v752 = vld [vmem:[#allocation10 + $0x158] sm:$0xff]
    %v753 = vld [vmem:[#allocation10 + $0x160] sm:$0xff]
    %v754 = vld [vmem:[#allocation10 + $0x168] sm:$0xff]
    %v755 = vld [vmem:[#allocation10 + $0x170] sm:$0xff]
    %v756 = vld [vmem:[#allocation10 + $0x178] sm:$0xff]
    %v757 = vld [vmem:[#allocation10 + $0x180] sm:$0xff]
    %v758 = vld [vmem:[#allocation10 + $0x188] sm:$0xff]
    %v759 = vld [vmem:[#allocation10 + $0x190] sm:$0xff]
    %v760 = vld [vmem:[#allocation10 + $0x198] sm:$0xff]
    %v761 = vld [vmem:[#allocation10 + $0x1a0] sm:$0xff]
    %v762 = vld [vmem:[#allocation10 + $0x1a8] sm:$0xff]
    %v763 = vld [vmem:[#allocation10 + $0x1b0] sm:$0xff]
    %v764 = vld [vmem:[#allocation10 + $0x1b8] sm:$0xff]
    %v765 = vld [vmem:[#allocation10 + $0x1c0] sm:$0xff]
    %v766 = vld [vmem:[#allocation10 + $0x1c8] sm:$0xff]
    %v767 = vld [vmem:[#allocation10 + $0x1d0] sm:$0xff]
    %v768 = vld [vmem:[#allocation10 + $0x1d8] sm:$0xff]
    %v769 = vld [vmem:[#allocation10 + $0x1e0] sm:$0xff]
    %v770 = vld [vmem:[#allocation10 + $0x1e8] sm:$0xff]
    %v771 = vld [vmem:[#allocation10 + $0x1f0] sm:$0xff]
    %v772 = vld [vmem:[#allocation10 + $0x1f8] sm:$0xff]
    %v773 = vld [vmem:[#allocation10 + $0x200] sm:$0xff]
    %v774 = vld [vmem:[#allocation10 + $0x208] sm:$0xff]
    %v775 = vld [vmem:[#allocation10 + $0x210] sm:$0xff]
    %v776 = vld [vmem:[#allocation10 + $0x218] sm:$0xff]
    %v777 = vld [vmem:[#allocation10 + $0x220] sm:$0xff]
    %v778 = vld [vmem:[#allocation10 + $0x228] sm:$0xff]
    %v779 = vld [vmem:[#allocation10 + $0x230] sm:$0xff]
    %v780 = vld [vmem:[#allocation10 + $0x238] sm:$0xff]
    %v781 = vld [vmem:[#allocation10 + $0x240] sm:$0xff]
    %v782 = vld [vmem:[#allocation10 + $0x248] sm:$0xff]
    %v783 = vld [vmem:[#allocation10 + $0x250] sm:$0xff]
    %v784 = vld [vmem:[#allocation10 + $0x258] sm:$0xff]
    %v785 = vld [vmem:[#allocation10 + $0x260] sm:$0xff]
    %v786 = vld [vmem:[#allocation10 + $0x268] sm:$0xff]
    %v787 = vld [vmem:[#allocation10 + $0x270] sm:$0xff]
    %v788 = vld [vmem:[#allocation10 + $0x278] sm:$0xff]
    %v789 = vld [vmem:[#allocation10 + $0x280] sm:$0xff]
    %v790 = vld [vmem:[#allocation10 + $0x288] sm:$0xff]
    %v791 = vld [vmem:[#allocation10 + $0x290] sm:$0xff]
    %v792 = vld [vmem:[#allocation10 + $0x298] sm:$0xff]
    %v793 = vld [vmem:[#allocation10 + $0x2a0] sm:$0xff]
    %v794 = vld [vmem:[#allocation10 + $0x2a8] sm:$0xff]
    %v795 = vld [vmem:[#allocation10 + $0x2b0] sm:$0xff]
    %v796 = vld [vmem:[#allocation10 + $0x2b8] sm:$0xff]
    %v797 = vld [vmem:[#allocation10 + $0x2c0] sm:$0xff]
    %v798 = vld [vmem:[#allocation10 + $0x2c8] sm:$0xff]
    %v799 = vld [vmem:[#allocation10 + $0x2d0] sm:$0xff]
    %v800 = vld [vmem:[#allocation10 + $0x2d8] sm:$0xff]
    %v801 = vld [vmem:[#allocation10 + $0x2e0] sm:$0xff]
    %v802 = vld [vmem:[#allocation10 + $0x2e8] sm:$0xff]
    %v803 = vld [vmem:[#allocation10 + $0x2f0] sm:$0xff]
    %v804 = vld [vmem:[#allocation10 + $0x2f8] sm:$0xff]
    %v805 = vld [vmem:[%s6] sm:$0xf]
    %v807 = vlaneseq
    %v808 = vshrl.u32 %v807, 7
    %v809 = vsub.s32 0, %v808
    %v810 = vrot.slane %v805, %v809
    %v811 = vlaneseq
    %v812 = vshrl.u32 %v811, 7
    %v813 = vsub.s32 1, %v812
    %v814 = vrot.slane %v805, %v813
    %v815 = vlaneseq
    %v816 = vshrl.u32 %v815, 7
    %v817 = vsub.s32 2, %v816
    %v818 = vrot.slane %v805, %v817
    %v819 = vlaneseq
    %v820 = vshrl.u32 %v819, 7
    %v821 = vsub.s32 3, %v820
    %v822 = vrot.slane %v805, %v821
    %v923 = vunpack.c.l.b16 %v709
    %v924 = vunpack.c.h.b16 %v709
    %v925 = vunpack.c.l.b16 %v710
    %v926 = vunpack.c.h.b16 %v710
    %v927 = vunpack.c.l.b16 %v711
    %v928 = vunpack.c.h.b16 %v711
    %v929 = vunpack.c.l.b16 %v712
    %v930 = vunpack.c.h.b16 %v712
    %v931 = vunpack.c.l.b16 %v713
    %v932 = vunpack.c.h.b16 %v713
    %v933 = vunpack.c.l.b16 %v714
    %v934 = vunpack.c.h.b16 %v714
    %v935 = vunpack.c.l.b16 %v715
    %v936 = vunpack.c.h.b16 %v715
    %v937 = vunpack.c.l.b16 %v716
    %v938 = vunpack.c.h.b16 %v716
    %v939 = vunpack.c.l.b16 %v717
    %v940 = vunpack.c.h.b16 %v717
    %v941 = vunpack.c.l.b16 %v718
    %v942 = vunpack.c.h.b16 %v718
    %v943 = vunpack.c.l.b16 %v719
    %v944 = vunpack.c.h.b16 %v719
    %v945 = vunpack.c.l.b16 %v720
    %v946 = vunpack.c.h.b16 %v720
    %v947 = vunpack.c.l.b16 %v721
    %v948 = vunpack.c.h.b16 %v721
    %v949 = vunpack.c.l.b16 %v722
    %v950 = vunpack.c.h.b16 %v722
    %v951 = vunpack.c.l.b16 %v723
    %v952 = vunpack.c.h.b16 %v723
    %v953 = vunpack.c.l.b16 %v724
    %v954 = vunpack.c.h.b16 %v724
    %v955 = vunpack.c.l.b16 %v725
    %v956 = vunpack.c.h.b16 %v725
    %v957 = vunpack.c.l.b16 %v726
    %v958 = vunpack.c.h.b16 %v726
    %v959 = vunpack.c.l.b16 %v727
    %v960 = vunpack.c.h.b16 %v727
    %v961 = vunpack.c.l.b16 %v728
    %v962 = vunpack.c.h.b16 %v728
    %v963 = vunpack.c.l.b16 %v729
    %v964 = vunpack.c.h.b16 %v729
    %v965 = vunpack.c.l.b16 %v730
    %v966 = vunpack.c.h.b16 %v730
    %v967 = vunpack.c.l.b16 %v731
    %v968 = vunpack.c.h.b16 %v731
    %v969 = vunpack.c.l.b16 %v732
    %v970 = vunpack.c.h.b16 %v732
    %v971 = vunpack.c.l.b16 %v733
    %v972 = vunpack.c.h.b16 %v733
    %v973 = vunpack.c.l.b16 %v734
    %v974 = vunpack.c.h.b16 %v734
    %v975 = vunpack.c.l.b16 %v735
    %v976 = vunpack.c.h.b16 %v735
    %v977 = vunpack.c.l.b16 %v736
    %v978 = vunpack.c.h.b16 %v736
    %v979 = vunpack.c.l.b16 %v737
    %v980 = vunpack.c.h.b16 %v737
    %v981 = vunpack.c.l.b16 %v738
    %v982 = vunpack.c.h.b16 %v738
    %v983 = vunpack.c.l.b16 %v739
    %v984 = vunpack.c.h.b16 %v739
    %v985 = vunpack.c.l.b16 %v740
    %v986 = vunpack.c.h.b16 %v740
    %v987 = vunpack.c.l.b16 %v741
    %v988 = vunpack.c.h.b16 %v741
    %v989 = vunpack.c.l.b16 %v742
    %v990 = vunpack.c.h.b16 %v742
    %v991 = vunpack.c.l.b16 %v743
    %v992 = vunpack.c.h.b16 %v743
    %v993 = vunpack.c.l.b16 %v744
    %v994 = vunpack.c.h.b16 %v744
    %v995 = vunpack.c.l.b16 %v745
    %v996 = vunpack.c.h.b16 %v745
    %v997 = vunpack.c.l.b16 %v746
    %v998 = vunpack.c.h.b16 %v746
    %v999 = vunpack.c.l.b16 %v747
    %v1000 = vunpack.c.h.b16 %v747
    %v1001 = vunpack.c.l.b16 %v748
    %v1002 = vunpack.c.h.b16 %v748
    %v1003 = vunpack.c.l.b16 %v749
    %v1004 = vunpack.c.h.b16 %v749
    %v1005 = vunpack.c.l.b16 %v750
    %v1006 = vunpack.c.h.b16 %v750
    %v1007 = vunpack.c.l.b16 %v751
    %v1008 = vunpack.c.h.b16 %v751
    %v1009 = vunpack.c.l.b16 %v752
    %v1010 = vunpack.c.h.b16 %v752
    %v1011 = vunpack.c.l.b16 %v753
    %v1012 = vunpack.c.h.b16 %v753
    %v1013 = vunpack.c.l.b16 %v754
    %v1014 = vunpack.c.h.b16 %v754
    %v1015 = vunpack.c.l.b16 %v755
    %v1016 = vunpack.c.h.b16 %v755
    %v1017 = vunpack.c.l.b16 %v756
    %v1018 = vunpack.c.h.b16 %v756
    %v1019 = vunpack.c.l.b16 %v757
    %v1020 = vunpack.c.h.b16 %v757
    %v1021 = vunpack.c.l.b16 %v758
    %v1022 = vunpack.c.h.b16 %v758
    %v1023 = vunpack.c.l.b16 %v759
    %v1024 = vunpack.c.h.b16 %v759
    %v1025 = vunpack.c.l.b16 %v760
    %v1026 = vunpack.c.h.b16 %v760
    %v1027 = vunpack.c.l.b16 %v761
    %v1028 = vunpack.c.h.b16 %v761
    %v1029 = vunpack.c.l.b16 %v762
    %v1030 = vunpack.c.h.b16 %v762
    %v1031 = vunpack.c.l.b16 %v763
    %v1032 = vunpack.c.h.b16 %v763
    %v1033 = vunpack.c.l.b16 %v764
    %v1034 = vunpack.c.h.b16 %v764
    %v1035 = vunpack.c.l.b16 %v765
    %v1036 = vunpack.c.h.b16 %v765
    %v1037 = vunpack.c.l.b16 %v766
    %v1038 = vunpack.c.h.b16 %v766
    %v1039 = vunpack.c.l.b16 %v767
    %v1040 = vunpack.c.h.b16 %v767
    %v1041 = vunpack.c.l.b16 %v768
    %v1042 = vunpack.c.h.b16 %v768
    %v1043 = vunpack.c.l.b16 %v769
    %v1044 = vunpack.c.h.b16 %v769
    %v1045 = vunpack.c.l.b16 %v770
    %v1046 = vunpack.c.h.b16 %v770
    %v1047 = vunpack.c.l.b16 %v771
    %v1048 = vunpack.c.h.b16 %v771
    %v1049 = vunpack.c.l.b16 %v772
    %v1050 = vunpack.c.h.b16 %v772
    %v1051 = vunpack.c.l.b16 %v773
    %v1052 = vunpack.c.h.b16 %v773
    %v1053 = vunpack.c.l.b16 %v774
    %v1054 = vunpack.c.h.b16 %v774
    %v1055 = vunpack.c.l.b16 %v775
    %v1056 = vunpack.c.h.b16 %v775
    %v1057 = vunpack.c.l.b16 %v776
    %v1058 = vunpack.c.h.b16 %v776
    %v1059 = vunpack.c.l.b16 %v777
    %v1060 = vunpack.c.h.b16 %v777
    %v1061 = vunpack.c.l.b16 %v778
    %v1062 = vunpack.c.h.b16 %v778
    %v1063 = vunpack.c.l.b16 %v779
    %v1064 = vunpack.c.h.b16 %v779
    %v1065 = vunpack.c.l.b16 %v780
    %v1066 = vunpack.c.h.b16 %v780
    %v1067 = vunpack.c.l.b16 %v781
    %v1068 = vunpack.c.h.b16 %v781
    %v1069 = vunpack.c.l.b16 %v782
    %v1070 = vunpack.c.h.b16 %v782
    %v1071 = vunpack.c.l.b16 %v783
    %v1072 = vunpack.c.h.b16 %v783
    %v1073 = vunpack.c.l.b16 %v784
    %v1074 = vunpack.c.h.b16 %v784
    %v1075 = vunpack.c.l.b16 %v785
    %v1076 = vunpack.c.h.b16 %v785
    %v1077 = vunpack.c.l.b16 %v786
    %v1078 = vunpack.c.h.b16 %v786
    %v1079 = vunpack.c.l.b16 %v787
    %v1080 = vunpack.c.h.b16 %v787
    %v1081 = vunpack.c.l.b16 %v788
    %v1082 = vunpack.c.h.b16 %v788
    %v1083 = vunpack.c.l.b16 %v789
    %v1084 = vunpack.c.h.b16 %v789
    %v1085 = vunpack.c.l.b16 %v790
    %v1086 = vunpack.c.h.b16 %v790
    %v1087 = vunpack.c.l.b16 %v791
    %v1088 = vunpack.c.h.b16 %v791
    %v1089 = vunpack.c.l.b16 %v792
    %v1090 = vunpack.c.h.b16 %v792
    %v1091 = vunpack.c.l.b16 %v793
    %v1092 = vunpack.c.h.b16 %v793
    %v1093 = vunpack.c.l.b16 %v794
    %v1094 = vunpack.c.h.b16 %v794
    %v1095 = vunpack.c.l.b16 %v795
    %v1096 = vunpack.c.h.b16 %v795
    %v1097 = vunpack.c.l.b16 %v796
    %v1098 = vunpack.c.h.b16 %v796
    %v1099 = vunpack.c.l.b16 %v797
    %v1100 = vunpack.c.h.b16 %v797
    %v1101 = vunpack.c.l.b16 %v798
    %v1102 = vunpack.c.h.b16 %v798
    %v1103 = vunpack.c.l.b16 %v799
    %v1104 = vunpack.c.h.b16 %v799
    %v1105 = vunpack.c.l.b16 %v800
    %v1106 = vunpack.c.h.b16 %v800
    %v1107 = vunpack.c.l.b16 %v801
    %v1108 = vunpack.c.h.b16 %v801
    %v1109 = vunpack.c.l.b16 %v802
    %v1110 = vunpack.c.h.b16 %v802
    %v1111 = vunpack.c.l.b16 %v803
    %v1112 = vunpack.c.h.b16 %v803
    %v1113 = vunpack.c.l.b16 %v804
    %v1114 = vunpack.c.h.b16 %v804
    %v1115 = vpack.c.b16 %v927, %v923
    %v1116 = vpack.c.b16 %v928, %v924
    %v1117 = vpack.c.b16 %v929, %v925
    %v1118 = vpack.c.b16 %v930, %v926
    %v1119 = vpack.c.b16 %v935, %v931
    %v1120 = vpack.c.b16 %v936, %v932
    %v1121 = vpack.c.b16 %v937, %v933
    %v1122 = vpack.c.b16 %v938, %v934
    %v1123 = vpack.c.b16 %v943, %v939
    %v1124 = vpack.c.b16 %v944, %v940
    %v1125 = vpack.c.b16 %v945, %v941
    %v1126 = vpack.c.b16 %v946, %v942
    %v1127 = vpack.c.b16 %v951, %v947
    %v1128 = vpack.c.b16 %v952, %v948
    %v1129 = vpack.c.b16 %v953, %v949
    %v1130 = vpack.c.b16 %v954, %v950
    %v1131 = vpack.c.b16 %v959, %v955
    %v1132 = vpack.c.b16 %v960, %v956
    %v1133 = vpack.c.b16 %v961, %v957
    %v1134 = vpack.c.b16 %v962, %v958
    %v1135 = vpack.c.b16 %v967, %v963
    %v1136 = vpack.c.b16 %v968, %v964
    %v1137 = vpack.c.b16 %v969, %v965
    %v1138 = vpack.c.b16 %v970, %v966
    %v1139 = vpack.c.b16 %v975, %v971
    %v1140 = vpack.c.b16 %v976, %v972
    %v1141 = vpack.c.b16 %v977, %v973
    %v1142 = vpack.c.b16 %v978, %v974
    %v1143 = vpack.c.b16 %v983, %v979
    %v1144 = vpack.c.b16 %v984, %v980
    %v1145 = vpack.c.b16 %v985, %v981
    %v1146 = vpack.c.b16 %v986, %v982
    %v1147 = vpack.c.b16 %v991, %v987
    %v1148 = vpack.c.b16 %v992, %v988
    %v1149 = vpack.c.b16 %v993, %v989
    %v1150 = vpack.c.b16 %v994, %v990
    %v1151 = vpack.c.b16 %v999, %v995
    %v1152 = vpack.c.b16 %v1000, %v996
    %v1153 = vpack.c.b16 %v1001, %v997
    %v1154 = vpack.c.b16 %v1002, %v998
    %v1155 = vpack.c.b16 %v1007, %v1003
    %v1156 = vpack.c.b16 %v1008, %v1004
    %v1157 = vpack.c.b16 %v1009, %v1005
    %v1158 = vpack.c.b16 %v1010, %v1006
    %v1159 = vpack.c.b16 %v1015, %v1011
    %v1160 = vpack.c.b16 %v1016, %v1012
    %v1161 = vpack.c.b16 %v1017, %v1013
    %v1162 = vpack.c.b16 %v1018, %v1014
    %v1163 = vpack.c.b16 %v1023, %v1019
    %v1164 = vpack.c.b16 %v1024, %v1020
    %v1165 = vpack.c.b16 %v1025, %v1021
    %v1166 = vpack.c.b16 %v1026, %v1022
    %v1167 = vpack.c.b16 %v1031, %v1027
    %v1168 = vpack.c.b16 %v1032, %v1028
    %v1169 = vpack.c.b16 %v1033, %v1029
    %v1170 = vpack.c.b16 %v1034, %v1030
    %v1171 = vpack.c.b16 %v1039, %v1035
    %v1172 = vpack.c.b16 %v1040, %v1036
    %v1173 = vpack.c.b16 %v1041, %v1037
    %v1174 = vpack.c.b16 %v1042, %v1038
    %v1175 = vpack.c.b16 %v1047, %v1043
    %v1176 = vpack.c.b16 %v1048, %v1044
    %v1177 = vpack.c.b16 %v1049, %v1045
    %v1178 = vpack.c.b16 %v1050, %v1046
    %v1179 = vpack.c.b16 %v1055, %v1051
    %v1180 = vpack.c.b16 %v1056, %v1052
    %v1181 = vpack.c.b16 %v1057, %v1053
    %v1182 = vpack.c.b16 %v1058, %v1054
    %v1183 = vpack.c.b16 %v1063, %v1059
    %v1184 = vpack.c.b16 %v1064, %v1060
    %v1185 = vpack.c.b16 %v1065, %v1061
    %v1186 = vpack.c.b16 %v1066, %v1062
    %v1187 = vpack.c.b16 %v1071, %v1067
    %v1188 = vpack.c.b16 %v1072, %v1068
    %v1189 = vpack.c.b16 %v1073, %v1069
    %v1190 = vpack.c.b16 %v1074, %v1070
    %v1191 = vpack.c.b16 %v1079, %v1075
    %v1192 = vpack.c.b16 %v1080, %v1076
    %v1193 = vpack.c.b16 %v1081, %v1077
    %v1194 = vpack.c.b16 %v1082, %v1078
    %v1195 = vpack.c.b16 %v1087, %v1083
    %v1196 = vpack.c.b16 %v1088, %v1084
    %v1197 = vpack.c.b16 %v1089, %v1085
    %v1198 = vpack.c.b16 %v1090, %v1086
    %v1199 = vpack.c.b16 %v1095, %v1091
    %v1200 = vpack.c.b16 %v1096, %v1092
    %v1201 = vpack.c.b16 %v1097, %v1093
    %v1202 = vpack.c.b16 %v1098, %v1094
    %v1203 = vpack.c.b16 %v1103, %v1099
    %v1204 = vpack.c.b16 %v1104, %v1100
    %v1205 = vpack.c.b16 %v1105, %v1101
    %v1206 = vpack.c.b16 %v1106, %v1102
    %v1207 = vpack.c.b16 %v1111, %v1107
    %v1208 = vpack.c.b16 %v1112, %v1108
    %v1209 = vpack.c.b16 %v1113, %v1109
    %v1210 = vpack.c.b16 %v1114, %v1110
    %1307 = vmatprep.subr.bf16.mxu0 %v1116
    %1308 = vmatpush1.bf16.msra.mxu0 %v1115
    %1309 = vmatprep.subr.bf16.mxu0 %v1120
    %1310 = vmatpush1.bf16.msra.mxu0 %v1119
    %1311 = vmatprep.subr.bf16.mxu0 %v1124
    %1312 = vmatpush1.bf16.msra.mxu0 %v1123
    %1313 = vmatprep.subr.bf16.mxu0 %v1128
    %1314 = vmatpush1.bf16.msra.mxu0 %v1127
    %1315 = vmatprep.subr.bf16.mxu0 %v1132
    %1316 = vmatpush1.bf16.msra.mxu0 %v1131
    %1317 = vmatprep.subr.bf16.mxu0 %v1136
    %1318 = vmatpush1.bf16.msra.mxu0 %v1135
    %1319 = vmatprep.subr.bf16.mxu0 %v1140
    %1320 = vmatpush1.bf16.msra.mxu0 %v1139
    %1321 = vmatprep.subr.bf16.mxu0 %v1144
    %1322 = vmatpush1.bf16.msra.mxu0 %v1143
    %1323 = vmatprep.subr.bf16.mxu0 %v1148
    %1324 = vmatpush1.bf16.msra.mxu0 %v1147
    %1325 = vmatprep.subr.bf16.mxu0 %v1152
    %1326 = vmatpush1.bf16.msra.mxu0 %v1151
    %1327 = vmatprep.subr.bf16.mxu0 %v1156
    %1328 = vmatpush1.bf16.msra.mxu0 %v1155
    %1329 = vmatprep.subr.bf16.mxu0 %v1160
    %1330 = vmatpush1.bf16.msra.mxu0 %v1159
    %1331 = vmatprep.subr.bf16.mxu0 %v1164
    %1332 = vmatpush1.bf16.msra.mxu0 %v1163
    %1333 = vmatprep.subr.bf16.mxu0 %v1168
    %1334 = vmatpush1.bf16.msra.mxu0 %v1167
    %1335 = vmatprep.subr.bf16.mxu0 %v1172
    %1336 = vmatpush1.bf16.msra.mxu0 %v1171
    %1337 = vmatprep.subr.bf16.mxu0 %v1176
    %1338 = vmatpush1.bf16.msra.mxu0 %v1175
    %1339 = vmatprep.mubr.bf16.mxu0 %v707
    %1340 = vmatmul.mubr.bf16.gmra.mrb[0].mxu0 %v706
    %v1341 = vpop.f32.mrb[0].mxu0
    %v1342 = vadd.f32 %v810, %v1341
    %v1343 = vpop.f32.mrb[0].mxu0
    %v1344 = vadd.f32 %v814, %v1343
    %v1345 = vpop.f32.mrb[0].mxu0
    %v1346 = vpop.f32.mrb[0].mxu0
    %1347 = vdwg.mxu0
    %1348 = vmatprep.subr.bf16.mxu0 %v1180
    %1349 = vmatpush1.bf16.msra.mxu0 %v1179
    %1350 = vmatprep.subr.bf16.mxu0 %v1184
    %1351 = vmatpush1.bf16.msra.mxu0 %v1183
    %1352 = vmatprep.subr.bf16.mxu0 %v1188
    %1353 = vmatpush1.bf16.msra.mxu0 %v1187
    %1354 = vmatprep.subr.bf16.mxu0 %v1192
    %1355 = vmatpush1.bf16.msra.mxu0 %v1191
    %1356 = vmatprep.subr.bf16.mxu0 %v1196
    %1357 = vmatpush1.bf16.msra.mxu0 %v1195
    %1358 = vmatprep.subr.bf16.mxu0 %v1200
    %1359 = vmatpush1.bf16.msra.mxu0 %v1199
    %1360 = vmatprep.subr.bf16.mxu0 %v1204
    %1361 = vmatpush1.bf16.msra.mxu0 %v1203
    %1362 = vmatprep.subr.bf16.mxu0 %v1208
    %1363 = vmatpush1.bf16.msra.mxu0 %v1207
    %1364 = vmatprep.subr.bf16.mxu0 0
    %1365 = vmatpush1.bf16.msra.mxu0 0
    %1366 = vmatprep.subr.bf16.mxu0 0
    %1367 = vmatpush1.bf16.msra.mxu0 0
    %1368 = vmatprep.subr.bf16.mxu0 0
    %1369 = vmatpush1.bf16.msra.mxu0 0
    %1370 = vmatprep.subr.bf16.mxu0 0
    %1371 = vmatpush1.bf16.msra.mxu0 0
    %1372 = vmatprep.subr.bf16.mxu0 0
    %1373 = vmatpush1.bf16.msra.mxu0 0
    %1374 = vmatprep.subr.bf16.mxu0 0
    %1375 = vmatpush1.bf16.msra.mxu0 0
    %1376 = vmatprep.subr.bf16.mxu0 0
    %1377 = vmatpush1.bf16.msra.mxu0 0
    %1378 = vmatprep.subr.bf16.mxu0 0
    %1379 = vmatpush1.bf16.msra.mxu0 0
    %1380 = vmatprep.mubr.bf16.mxu0 0
    %1381 = vmatmul.mubr.bf16.gmra.mrb[0].mxu0 %v708
    %v1382 = vpop.f32.mrb[0].mxu0
    %v1383 = vadd.f32 %v1342, %v1382
    %v1384 = vpop.f32.mrb[0].mxu0
    %v1385 = vadd.f32 %v1344, %v1384
    %v1386 = vpop.f32.mrb[0].mxu0
    %v1387 = vpop.f32.mrb[0].mxu0
    %1388 = vdwg.mxu0
    %1389 = vmatprep.subr.bf16.mxu0 %v1118
    %1390 = vmatpush1.bf16.msra.mxu0 %v1117
    %1391 = vmatprep.subr.bf16.mxu0 %v1122
    %1392 = vmatpush1.bf16.msra.mxu0 %v1121
    %1393 = vmatprep.subr.bf16.mxu0 %v1126
    %1394 = vmatpush1.bf16.msra.mxu0 %v1125
    %1395 = vmatprep.subr.bf16.mxu0 %v1130
    %1396 = vmatpush1.bf16.msra.mxu0 %v1129
    %1397 = vmatprep.subr.bf16.mxu0 %v1134
    %1398 = vmatpush1.bf16.msra.mxu0 %v1133
    %1399 = vmatprep.subr.bf16.mxu0 %v1138
    %1400 = vmatpush1.bf16.msra.mxu0 %v1137
    %1401 = vmatprep.subr.bf16.mxu0 %v1142
    %1402 = vmatpush1.bf16.msra.mxu0 %v1141
    %1403 = vmatprep.subr.bf16.mxu0 %v1146
    %1404 = vmatpush1.bf16.msra.mxu0 %v1145
    %1405 = vmatprep.subr.bf16.mxu0 %v1150
    %1406 = vmatpush1.bf16.msra.mxu0 %v1149
    %1407 = vmatprep.subr.bf16.mxu0 %v1154
    %1408 = vmatpush1.bf16.msra.mxu0 %v1153
    %1409 = vmatprep.subr.bf16.mxu0 %v1158
    %1410 = vmatpush1.bf16.msra.mxu0 %v1157
    %1411 = vmatprep.subr.bf16.mxu0 %v1162
    %1412 = vmatpush1.bf16.msra.mxu0 %v1161
    %1413 = vmatprep.subr.bf16.mxu0 %v1166
    %1414 = vmatpush1.bf16.msra.mxu0 %v1165
    %1415 = vmatprep.subr.bf16.mxu0 %v1170
    %1416 = vmatpush1.bf16.msra.mxu0 %v1169
    %1417 = vmatprep.subr.bf16.mxu0 %v1174
    %1418 = vmatpush1.bf16.msra.mxu0 %v1173
    %1419 = vmatprep.subr.bf16.mxu0 %v1178
    %1420 = vmatpush1.bf16.msra.mxu0 %v1177
    %1421 = vmatprep.mubr.bf16.mxu0 %v707
    %1422 = vmatmul.mubr.bf16.gmra.mrb[0].mxu0 %v706
    %v1423 = vpop.f32.mrb[0].mxu0
    %v1424 = vadd.f32 %v818, %v1423
    %v1425 = vpop.f32.mrb[0].mxu0
    %v1426 = vadd.f32 %v822, %v1425
    %v1427 = vpop.f32.mrb[0].mxu0
    %v1428 = vpop.f32.mrb[0].mxu0
    %1429 = vdwg.mxu0
    %1430 = vmatprep.subr.bf16.mxu0 %v1182
    %1431 = vmatpush1.bf16.msra.mxu0 %v1181
    %1432 = vmatprep.subr.bf16.mxu0 %v1186
    %1433 = vmatpush1.bf16.msra.mxu0 %v1185
    %1434 = vmatprep.subr.bf16.mxu0 %v1190
    %1435 = vmatpush1.bf16.msra.mxu0 %v1189
    %1436 = vmatprep.subr.bf16.mxu0 %v1194
    %1437 = vmatpush1.bf16.msra.mxu0 %v1193
    %1438 = vmatprep.subr.bf16.mxu0 %v1198
    %1439 = vmatpush1.bf16.msra.mxu0 %v1197
    %1440 = vmatprep.subr.bf16.mxu0 %v1202
    %1441 = vmatpush1.bf16.msra.mxu0 %v1201
    %1442 = vmatprep.subr.bf16.mxu0 %v1206
    %1443 = vmatpush1.bf16.msra.mxu0 %v1205
    %1444 = vmatprep.subr.bf16.mxu0 %v1210
    %1445 = vmatpush1.bf16.msra.mxu0 %v1209
    %1446 = vmatprep.subr.bf16.mxu0 0
    %1447 = vmatpush1.bf16.msra.mxu0 0
    %1448 = vmatprep.subr.bf16.mxu0 0
    %1449 = vmatpush1.bf16.msra.mxu0 0
    %1450 = vmatprep.subr.bf16.mxu0 0
    %1451 = vmatpush1.bf16.msra.mxu0 0
    %1452 = vmatprep.subr.bf16.mxu0 0
    %1453 = vmatpush1.bf16.msra.mxu0 0
    %1454 = vmatprep.subr.bf16.mxu0 0
    %1455 = vmatpush1.bf16.msra.mxu0 0
    %1456 = vmatprep.subr.bf16.mxu0 0
    %1457 = vmatpush1.bf16.msra.mxu0 0
    %1458 = vmatprep.subr.bf16.mxu0 0
    %1459 = vmatpush1.bf16.msra.mxu0 0
    %1460 = vmatprep.subr.bf16.mxu0 0
    %1461 = vmatpush1.bf16.msra.mxu0 0
    %1462 = vmatprep.mubr.bf16.mxu0 0
    %1463 = vmatmul.mubr.bf16.gmra.mrb[0].mxu0 %v708
    %v1464 = vpop.f32.mrb[0].mxu0
    %v1465 = vadd.f32 %v1424, %v1464
    %v1466 = vpop.f32.mrb[0].mxu0
    %v1467 = vadd.f32 %v1426, %v1466
    %v1468 = vpop.f32.mrb[0].mxu0
    %v1469 = vpop.f32.mrb[0].mxu0
    %1470 = vdwg.mxu0
    %v1471 = vmax.f32 %v1383, 0.0
    %v1472 = vmax.f32 %v1385, 0.0
    %v1473 = vmax.f32 %v1465, 0.0
    %v1474 = vmax.f32 %v1467, 0.0
    %v1475 = vpack.c.bf16 %v1471, %v1471
    %v1476 = vpack.c.bf16 %v1472, %v1472
    %v1477 = vpack.c.bf16 %v1473, %v1473
    %v1478 = vpack.c.bf16 %v1474, %v1474
    %v1479 = vld [vmem:[#allocation11] sm:$0xff]
    %v1480 = vld [vmem:[#allocation11 + $0x8] sm:$0xff]
    %v1481 = vld [vmem:[#allocation11 + $0x10] sm:$0xff]
    %v1482 = vld [vmem:[#allocation11 + $0x18] sm:$0xff]
    %v1483 = vld [vmem:[#allocation11 + $0x20] sm:$0xff]
    %v1484 = vld [vmem:[#allocation11 + $0x28] sm:$0xff]
    %v1485 = vld [vmem:[#allocation11 + $0x30] sm:$0xff]
    %v1486 = vld [vmem:[#allocation11 + $0x38] sm:$0xff]
    %v1487 = vld [vmem:[#allocation11 + $0x40] sm:$0xff]
    %v1488 = vld [vmem:[#allocation11 + $0x48] sm:$0xff]
    %v1489 = vld [vmem:[#allocation11 + $0x50] sm:$0xff]
    %v1490 = vld [vmem:[#allocation11 + $0x58] sm:$0xff]
    %v1491 = vld [vmem:[#allocation11 + $0x60] sm:$0xff]
    %v1492 = vld [vmem:[#allocation11 + $0x68] sm:$0xff]
    %v1493 = vld [vmem:[#allocation11 + $0x70] sm:$0xff]
    %v1494 = vld [vmem:[#allocation11 + $0x78] sm:$0xff]
    %v1495 = vld [vmem:[#allocation11 + $0x80] sm:$0xff]
    %v1496 = vld [vmem:[#allocation11 + $0x88] sm:$0xff]
    %v1497 = vld [vmem:[#allocation11 + $0x90] sm:$0xff]
    %v1498 = vld [vmem:[#allocation11 + $0x98] sm:$0xff]
    %v1499 = vld [vmem:[#allocation11 + $0xa0] sm:$0xff]
    %v1500 = vld [vmem:[#allocation11 + $0xa8] sm:$0xff]
    %v1501 = vld [vmem:[#allocation11 + $0xb0] sm:$0xff]
    %v1502 = vld [vmem:[#allocation11 + $0xb8] sm:$0xff]
    %v1503 = vld [vmem:[#allocation11 + $0xc0] sm:$0xff]
    %v1504 = vld [vmem:[#allocation11 + $0xc8] sm:$0xff]
    %v1505 = vld [vmem:[#allocation11 + $0xd0] sm:$0xff]
    %v1506 = vld [vmem:[#allocation11 + $0xd8] sm:$0xff]
    %v1507 = vld [vmem:[#allocation11 + $0xe0] sm:$0xff]
    %v1508 = vld [vmem:[#allocation11 + $0xe8] sm:$0xff]
    %v1509 = vld [vmem:[#allocation11 + $0xf0] sm:$0xff]
    %v1510 = vld [vmem:[#allocation11 + $0xf8] sm:$0xff]
    %v1511 = vld [vmem:[#allocation11 + $0x100] sm:$0xff]
    %v1512 = vld [vmem:[#allocation11 + $0x108] sm:$0xff]
    %v1513 = vld [vmem:[#allocation11 + $0x110] sm:$0xff]
    %v1514 = vld [vmem:[#allocation11 + $0x118] sm:$0xff]
    %v1515 = vld [vmem:[#allocation11 + $0x120] sm:$0xff]
    %v1516 = vld [vmem:[#allocation11 + $0x128] sm:$0xff]
    %v1517 = vld [vmem:[#allocation11 + $0x130] sm:$0xff]
    %v1518 = vld [vmem:[#allocation11 + $0x138] sm:$0xff]
    %v1519 = vld [vmem:[#allocation11 + $0x140] sm:$0xff]
    %v1520 = vld [vmem:[#allocation11 + $0x148] sm:$0xff]
    %v1521 = vld [vmem:[#allocation11 + $0x150] sm:$0xff]
    %v1522 = vld [vmem:[#allocation11 + $0x158] sm:$0xff]
    %v1523 = vld [vmem:[#allocation11 + $0x160] sm:$0xff]
    %v1524 = vld [vmem:[#allocation11 + $0x168] sm:$0xff]
    %v1525 = vld [vmem:[#allocation11 + $0x170] sm:$0xff]
    %v1526 = vld [vmem:[#allocation11 + $0x178] sm:$0xff]
    %v1527 = vld [vmem:[#allocation11 + $0x180] sm:$0xff]
    %v1528 = vld [vmem:[#allocation11 + $0x188] sm:$0xff]
    %v1529 = vld [vmem:[#allocation11 + $0x190] sm:$0xff]
    %v1530 = vld [vmem:[#allocation11 + $0x198] sm:$0xff]
    %v1531 = vld [vmem:[#allocation11 + $0x1a0] sm:$0xff]
    %v1532 = vld [vmem:[#allocation11 + $0x1a8] sm:$0xff]
    %v1533 = vld [vmem:[#allocation11 + $0x1b0] sm:$0xff]
    %v1534 = vld [vmem:[#allocation11 + $0x1b8] sm:$0xff]
    %v1535 = vld [vmem:[#allocation11 + $0x1c0] sm:$0xff]
    %v1536 = vld [vmem:[#allocation11 + $0x1c8] sm:$0xff]
    %v1537 = vld [vmem:[#allocation11 + $0x1d0] sm:$0xff]
    %v1538 = vld [vmem:[#allocation11 + $0x1d8] sm:$0xff]
    %v1539 = vld [vmem:[#allocation11 + $0x1e0] sm:$0xff]
    %v1540 = vld [vmem:[#allocation11 + $0x1e8] sm:$0xff]
    %v1541 = vld [vmem:[#allocation11 + $0x1f0] sm:$0xff]
    %v1542 = vld [vmem:[#allocation11 + $0x1f8] sm:$0xff]
    %v1543 = vld [vmem:[#allocation11 + $0x200] sm:$0xff]
    %v1544 = vld [vmem:[#allocation11 + $0x208] sm:$0xff]
    %v1545 = vld [vmem:[#allocation11 + $0x210] sm:$0xff]
    %v1546 = vld [vmem:[#allocation11 + $0x218] sm:$0xff]
    %v1547 = vld [vmem:[#allocation11 + $0x220] sm:$0xff]
    %v1548 = vld [vmem:[#allocation11 + $0x228] sm:$0xff]
    %v1549 = vld [vmem:[#allocation11 + $0x230] sm:$0xff]
    %v1550 = vld [vmem:[#allocation11 + $0x238] sm:$0xff]
    %v1551 = vld [vmem:[#allocation11 + $0x240] sm:$0xff]
    %v1552 = vld [vmem:[#allocation11 + $0x248] sm:$0xff]
    %v1553 = vld [vmem:[#allocation11 + $0x250] sm:$0xff]
    %v1554 = vld [vmem:[#allocation11 + $0x258] sm:$0xff]
    %v1555 = vld [vmem:[#allocation11 + $0x260] sm:$0xff]
    %v1556 = vld [vmem:[#allocation11 + $0x268] sm:$0xff]
    %v1557 = vld [vmem:[#allocation11 + $0x270] sm:$0xff]
    %v1558 = vld [vmem:[#allocation11 + $0x278] sm:$0xff]
    %v1559 = vld [vmem:[#allocation11 + $0x280] sm:$0xff]
    %v1560 = vld [vmem:[#allocation11 + $0x288] sm:$0xff]
    %v1561 = vld [vmem:[#allocation11 + $0x290] sm:$0xff]
    %v1562 = vld [vmem:[#allocation11 + $0x298] sm:$0xff]
    %v1563 = vld [vmem:[#allocation11 + $0x2a0] sm:$0xff]
    %v1564 = vld [vmem:[#allocation11 + $0x2a8] sm:$0xff]
    %v1565 = vld [vmem:[#allocation11 + $0x2b0] sm:$0xff]
    %v1566 = vld [vmem:[#allocation11 + $0x2b8] sm:$0xff]
    %v1567 = vld [vmem:[#allocation11 + $0x2c0] sm:$0xff]
    %v1568 = vld [vmem:[#allocation11 + $0x2c8] sm:$0xff]
    %v1569 = vld [vmem:[#allocation11 + $0x2d0] sm:$0xff]
    %v1570 = vld [vmem:[#allocation11 + $0x2d8] sm:$0xff]
    %v1571 = vld [vmem:[#allocation11 + $0x2e0] sm:$0xff]
    %v1572 = vld [vmem:[#allocation11 + $0x2e8] sm:$0xff]
    %v1573 = vld [vmem:[#allocation11 + $0x2f0] sm:$0xff]
    %v1574 = vld [vmem:[#allocation11 + $0x2f8] sm:$0xff]
    %v1575 = vld [vmem:[#allocation11 + $0x300] sm:$0xff]
    %v1576 = vld [vmem:[#allocation11 + $0x308] sm:$0xff]
    %v1577 = vld [vmem:[#allocation11 + $0x310] sm:$0xff]
    %v1578 = vld [vmem:[#allocation11 + $0x318] sm:$0xff]
    %v1579 = vld [vmem:[#allocation11 + $0x320] sm:$0xff]
    %v1580 = vld [vmem:[#allocation11 + $0x328] sm:$0xff]
    %v1581 = vld [vmem:[#allocation11 + $0x330] sm:$0xff]
    %v1582 = vld [vmem:[#allocation11 + $0x338] sm:$0xff]
    %v1583 = vld [vmem:[#allocation11 + $0x340] sm:$0xff]
    %v1584 = vld [vmem:[#allocation11 + $0x348] sm:$0xff]
    %v1585 = vld [vmem:[#allocation11 + $0x350] sm:$0xff]
    %v1586 = vld [vmem:[#allocation11 + $0x358] sm:$0xff]
    %v1587 = vld [vmem:[#allocation11 + $0x360] sm:$0xff]
    %v1588 = vld [vmem:[#allocation11 + $0x368] sm:$0xff]
    %v1589 = vld [vmem:[#allocation11 + $0x370] sm:$0xff]
    %v1590 = vld [vmem:[#allocation11 + $0x378] sm:$0xff]
    %v1591 = vld [vmem:[#allocation11 + $0x380] sm:$0xff]
    %v1592 = vld [vmem:[#allocation11 + $0x388] sm:$0xff]
    %v1593 = vld [vmem:[#allocation11 + $0x390] sm:$0xff]
    %v1594 = vld [vmem:[#allocation11 + $0x398] sm:$0xff]
    %v1595 = vld [vmem:[#allocation11 + $0x3a0] sm:$0xff]
    %v1596 = vld [vmem:[#allocation11 + $0x3a8] sm:$0xff]
    %v1597 = vld [vmem:[#allocation11 + $0x3b0] sm:$0xff]
    %v1598 = vld [vmem:[#allocation11 + $0x3b8] sm:$0xff]
    %v1599 = vld [vmem:[#allocation11 + $0x3c0] sm:$0xff]
    %v1600 = vld [vmem:[#allocation11 + $0x3c8] sm:$0xff]
    %v1601 = vld [vmem:[#allocation11 + $0x3d0] sm:$0xff]
    %v1602 = vld [vmem:[#allocation11 + $0x3d8] sm:$0xff]
    %v1603 = vld [vmem:[#allocation11 + $0x3e0] sm:$0xff]
    %v1604 = vld [vmem:[#allocation11 + $0x3e8] sm:$0xff]
    %v1605 = vld [vmem:[#allocation11 + $0x3f0] sm:$0xff]
    %v1606 = vld [vmem:[#allocation11 + $0x3f8] sm:$0xff]
    %v1607 = vld [vmem:[%s8] sm:$0xf]
    %v1609 = vlaneseq
    %v1610 = vshrl.u32 %v1609, 7
    %v1611 = vsub.s32 0, %v1610
    %v1612 = vrot.slane %v1607, %v1611
    %v1613 = vlaneseq
    %v1614 = vshrl.u32 %v1613, 7
    %v1615 = vsub.s32 1, %v1614
    %v1616 = vrot.slane %v1607, %v1615
    %v1617 = vlaneseq
    %v1618 = vshrl.u32 %v1617, 7
    %v1619 = vsub.s32 2, %v1618
    %v1620 = vrot.slane %v1607, %v1619
    %v1621 = vlaneseq
    %v1622 = vshrl.u32 %v1621, 7
    %v1623 = vsub.s32 3, %v1622
    %v1624 = vrot.slane %v1607, %v1623
    %v1757 = vunpack.c.l.b16 %v1479
    %v1758 = vunpack.c.h.b16 %v1479
    %v1759 = vunpack.c.l.b16 %v1480
    %v1760 = vunpack.c.h.b16 %v1480
    %v1761 = vunpack.c.l.b16 %v1481
    %v1762 = vunpack.c.h.b16 %v1481
    %v1763 = vunpack.c.l.b16 %v1482
    %v1764 = vunpack.c.h.b16 %v1482
    %v1765 = vunpack.c.l.b16 %v1483
    %v1766 = vunpack.c.h.b16 %v1483
    %v1767 = vunpack.c.l.b16 %v1484
    %v1768 = vunpack.c.h.b16 %v1484
    %v1769 = vunpack.c.l.b16 %v1485
    %v1770 = vunpack.c.h.b16 %v1485
    %v1771 = vunpack.c.l.b16 %v1486
    %v1772 = vunpack.c.h.b16 %v1486
    %v1773 = vunpack.c.l.b16 %v1487
    %v1774 = vunpack.c.h.b16 %v1487
    %v1775 = vunpack.c.l.b16 %v1488
    %v1776 = vunpack.c.h.b16 %v1488
    %v1777 = vunpack.c.l.b16 %v1489
    %v1778 = vunpack.c.h.b16 %v1489
    %v1779 = vunpack.c.l.b16 %v1490
    %v1780 = vunpack.c.h.b16 %v1490
    %v1781 = vunpack.c.l.b16 %v1491
    %v1782 = vunpack.c.h.b16 %v1491
    %v1783 = vunpack.c.l.b16 %v1492
    %v1784 = vunpack.c.h.b16 %v1492
    %v1785 = vunpack.c.l.b16 %v1493
    %v1786 = vunpack.c.h.b16 %v1493
    %v1787 = vunpack.c.l.b16 %v1494
    %v1788 = vunpack.c.h.b16 %v1494
    %v1789 = vunpack.c.l.b16 %v1495
    %v1790 = vunpack.c.h.b16 %v1495
    %v1791 = vunpack.c.l.b16 %v1496
    %v1792 = vunpack.c.h.b16 %v1496
    %v1793 = vunpack.c.l.b16 %v1497
    %v1794 = vunpack.c.h.b16 %v1497
    %v1795 = vunpack.c.l.b16 %v1498
    %v1796 = vunpack.c.h.b16 %v1498
    %v1797 = vunpack.c.l.b16 %v1499
    %v1798 = vunpack.c.h.b16 %v1499
    %v1799 = vunpack.c.l.b16 %v1500
    %v1800 = vunpack.c.h.b16 %v1500
    %v1801 = vunpack.c.l.b16 %v1501
    %v1802 = vunpack.c.h.b16 %v1501
    %v1803 = vunpack.c.l.b16 %v1502
    %v1804 = vunpack.c.h.b16 %v1502
    %v1805 = vunpack.c.l.b16 %v1503
    %v1806 = vunpack.c.h.b16 %v1503
    %v1807 = vunpack.c.l.b16 %v1504
    %v1808 = vunpack.c.h.b16 %v1504
    %v1809 = vunpack.c.l.b16 %v1505
    %v1810 = vunpack.c.h.b16 %v1505
    %v1811 = vunpack.c.l.b16 %v1506
    %v1812 = vunpack.c.h.b16 %v1506
    %v1813 = vunpack.c.l.b16 %v1507
    %v1814 = vunpack.c.h.b16 %v1507
    %v1815 = vunpack.c.l.b16 %v1508
    %v1816 = vunpack.c.h.b16 %v1508
    %v1817 = vunpack.c.l.b16 %v1509
    %v1818 = vunpack.c.h.b16 %v1509
    %v1819 = vunpack.c.l.b16 %v1510
    %v1820 = vunpack.c.h.b16 %v1510
    %v1821 = vunpack.c.l.b16 %v1511
    %v1822 = vunpack.c.h.b16 %v1511
    %v1823 = vunpack.c.l.b16 %v1512
    %v1824 = vunpack.c.h.b16 %v1512
    %v1825 = vunpack.c.l.b16 %v1513
    %v1826 = vunpack.c.h.b16 %v1513
    %v1827 = vunpack.c.l.b16 %v1514
    %v1828 = vunpack.c.h.b16 %v1514
    %v1829 = vunpack.c.l.b16 %v1515
    %v1830 = vunpack.c.h.b16 %v1515
    %v1831 = vunpack.c.l.b16 %v1516
    %v1832 = vunpack.c.h.b16 %v1516
    %v1833 = vunpack.c.l.b16 %v1517
    %v1834 = vunpack.c.h.b16 %v1517
    %v1835 = vunpack.c.l.b16 %v1518
    %v1836 = vunpack.c.h.b16 %v1518
    %v1837 = vunpack.c.l.b16 %v1519
    %v1838 = vunpack.c.h.b16 %v1519
    %v1839 = vunpack.c.l.b16 %v1520
    %v1840 = vunpack.c.h.b16 %v1520
    %v1841 = vunpack.c.l.b16 %v1521
    %v1842 = vunpack.c.h.b16 %v1521
    %v1843 = vunpack.c.l.b16 %v1522
    %v1844 = vunpack.c.h.b16 %v1522
    %v1845 = vunpack.c.l.b16 %v1523
    %v1846 = vunpack.c.h.b16 %v1523
    %v1847 = vunpack.c.l.b16 %v1524
    %v1848 = vunpack.c.h.b16 %v1524
    %v1849 = vunpack.c.l.b16 %v1525
    %v1850 = vunpack.c.h.b16 %v1525
    %v1851 = vunpack.c.l.b16 %v1526
    %v1852 = vunpack.c.h.b16 %v1526
    %v1853 = vunpack.c.l.b16 %v1527
    %v1854 = vunpack.c.h.b16 %v1527
    %v1855 = vunpack.c.l.b16 %v1528
    %v1856 = vunpack.c.h.b16 %v1528
    %v1857 = vunpack.c.l.b16 %v1529
    %v1858 = vunpack.c.h.b16 %v1529
    %v1859 = vunpack.c.l.b16 %v1530
    %v1860 = vunpack.c.h.b16 %v1530
    %v1861 = vunpack.c.l.b16 %v1531
    %v1862 = vunpack.c.h.b16 %v1531
    %v1863 = vunpack.c.l.b16 %v1532
    %v1864 = vunpack.c.h.b16 %v1532
    %v1865 = vunpack.c.l.b16 %v1533
    %v1866 = vunpack.c.h.b16 %v1533
    %v1867 = vunpack.c.l.b16 %v1534
    %v1868 = vunpack.c.h.b16 %v1534
    %v1869 = vunpack.c.l.b16 %v1535
    %v1870 = vunpack.c.h.b16 %v1535
    %v1871 = vunpack.c.l.b16 %v1536
    %v1872 = vunpack.c.h.b16 %v1536
    %v1873 = vunpack.c.l.b16 %v1537
    %v1874 = vunpack.c.h.b16 %v1537
    %v1875 = vunpack.c.l.b16 %v1538
    %v1876 = vunpack.c.h.b16 %v1538
    %v1877 = vunpack.c.l.b16 %v1539
    %v1878 = vunpack.c.h.b16 %v1539
    %v1879 = vunpack.c.l.b16 %v1540
    %v1880 = vunpack.c.h.b16 %v1540
    %v1881 = vunpack.c.l.b16 %v1541
    %v1882 = vunpack.c.h.b16 %v1541
    %v1883 = vunpack.c.l.b16 %v1542
    %v1884 = vunpack.c.h.b16 %v1542
    %v1885 = vunpack.c.l.b16 %v1543
    %v1886 = vunpack.c.h.b16 %v1543
    %v1887 = vunpack.c.l.b16 %v1544
    %v1888 = vunpack.c.h.b16 %v1544
    %v1889 = vunpack.c.l.b16 %v1545
    %v1890 = vunpack.c.h.b16 %v1545
    %v1891 = vunpack.c.l.b16 %v1546
    %v1892 = vunpack.c.h.b16 %v1546
    %v1893 = vunpack.c.l.b16 %v1547
    %v1894 = vunpack.c.h.b16 %v1547
    %v1895 = vunpack.c.l.b16 %v1548
    %v1896 = vunpack.c.h.b16 %v1548
    %v1897 = vunpack.c.l.b16 %v1549
    %v1898 = vunpack.c.h.b16 %v1549
    %v1899 = vunpack.c.l.b16 %v1550
    %v1900 = vunpack.c.h.b16 %v1550
    %v1901 = vunpack.c.l.b16 %v1551
    %v1902 = vunpack.c.h.b16 %v1551
    %v1903 = vunpack.c.l.b16 %v1552
    %v1904 = vunpack.c.h.b16 %v1552
    %v1905 = vunpack.c.l.b16 %v1553
    %v1906 = vunpack.c.h.b16 %v1553
    %v1907 = vunpack.c.l.b16 %v1554
    %v1908 = vunpack.c.h.b16 %v1554
    %v1909 = vunpack.c.l.b16 %v1555
    %v1910 = vunpack.c.h.b16 %v1555
    %v1911 = vunpack.c.l.b16 %v1556
    %v1912 = vunpack.c.h.b16 %v1556
    %v1913 = vunpack.c.l.b16 %v1557
    %v1914 = vunpack.c.h.b16 %v1557
    %v1915 = vunpack.c.l.b16 %v1558
    %v1916 = vunpack.c.h.b16 %v1558
    %v1917 = vunpack.c.l.b16 %v1559
    %v1918 = vunpack.c.h.b16 %v1559
    %v1919 = vunpack.c.l.b16 %v1560
    %v1920 = vunpack.c.h.b16 %v1560
    %v1921 = vunpack.c.l.b16 %v1561
    %v1922 = vunpack.c.h.b16 %v1561
    %v1923 = vunpack.c.l.b16 %v1562
    %v1924 = vunpack.c.h.b16 %v1562
    %v1925 = vunpack.c.l.b16 %v1563
    %v1926 = vunpack.c.h.b16 %v1563
    %v1927 = vunpack.c.l.b16 %v1564
    %v1928 = vunpack.c.h.b16 %v1564
    %v1929 = vunpack.c.l.b16 %v1565
    %v1930 = vunpack.c.h.b16 %v1565
    %v1931 = vunpack.c.l.b16 %v1566
    %v1932 = vunpack.c.h.b16 %v1566
    %v1933 = vunpack.c.l.b16 %v1567
    %v1934 = vunpack.c.h.b16 %v1567
    %v1935 = vunpack.c.l.b16 %v1568
    %v1936 = vunpack.c.h.b16 %v1568
    %v1937 = vunpack.c.l.b16 %v1569
    %v1938 = vunpack.c.h.b16 %v1569
    %v1939 = vunpack.c.l.b16 %v1570
    %v1940 = vunpack.c.h.b16 %v1570
    %v1941 = vunpack.c.l.b16 %v1571
    %v1942 = vunpack.c.h.b16 %v1571
    %v1943 = vunpack.c.l.b16 %v1572
    %v1944 = vunpack.c.h.b16 %v1572
    %v1945 = vunpack.c.l.b16 %v1573
    %v1946 = vunpack.c.h.b16 %v1573
    %v1947 = vunpack.c.l.b16 %v1574
    %v1948 = vunpack.c.h.b16 %v1574
    %v1949 = vunpack.c.l.b16 %v1575
    %v1950 = vunpack.c.h.b16 %v1575
    %v1951 = vunpack.c.l.b16 %v1576
    %v1952 = vunpack.c.h.b16 %v1576
    %v1953 = vunpack.c.l.b16 %v1577
    %v1954 = vunpack.c.h.b16 %v1577
    %v1955 = vunpack.c.l.b16 %v1578
    %v1956 = vunpack.c.h.b16 %v1578
    %v1957 = vunpack.c.l.b16 %v1579
    %v1958 = vunpack.c.h.b16 %v1579
    %v1959 = vunpack.c.l.b16 %v1580
    %v1960 = vunpack.c.h.b16 %v1580
    %v1961 = vunpack.c.l.b16 %v1581
    %v1962 = vunpack.c.h.b16 %v1581
    %v1963 = vunpack.c.l.b16 %v1582
    %v1964 = vunpack.c.h.b16 %v1582
    %v1965 = vunpack.c.l.b16 %v1583
    %v1966 = vunpack.c.h.b16 %v1583
    %v1967 = vunpack.c.l.b16 %v1584
    %v1968 = vunpack.c.h.b16 %v1584
    %v1969 = vunpack.c.l.b16 %v1585
    %v1970 = vunpack.c.h.b16 %v1585
    %v1971 = vunpack.c.l.b16 %v1586
    %v1972 = vunpack.c.h.b16 %v1586
    %v1973 = vunpack.c.l.b16 %v1587
    %v1974 = vunpack.c.h.b16 %v1587
    %v1975 = vunpack.c.l.b16 %v1588
    %v1976 = vunpack.c.h.b16 %v1588
    %v1977 = vunpack.c.l.b16 %v1589
    %v1978 = vunpack.c.h.b16 %v1589
    %v1979 = vunpack.c.l.b16 %v1590
    %v1980 = vunpack.c.h.b16 %v1590
    %v1981 = vunpack.c.l.b16 %v1591
    %v1982 = vunpack.c.h.b16 %v1591
    %v1983 = vunpack.c.l.b16 %v1592
    %v1984 = vunpack.c.h.b16 %v1592
    %v1985 = vunpack.c.l.b16 %v1593
    %v1986 = vunpack.c.h.b16 %v1593
    %v1987 = vunpack.c.l.b16 %v1594
    %v1988 = vunpack.c.h.b16 %v1594
    %v1989 = vunpack.c.l.b16 %v1595
    %v1990 = vunpack.c.h.b16 %v1595
    %v1991 = vunpack.c.l.b16 %v1596
    %v1992 = vunpack.c.h.b16 %v1596
    %v1993 = vunpack.c.l.b16 %v1597
    %v1994 = vunpack.c.h.b16 %v1597
    %v1995 = vunpack.c.l.b16 %v1598
    %v1996 = vunpack.c.h.b16 %v1598
    %v1997 = vunpack.c.l.b16 %v1599
    %v1998 = vunpack.c.h.b16 %v1599
    %v1999 = vunpack.c.l.b16 %v1600
    %v2000 = vunpack.c.h.b16 %v1600
    %v2001 = vunpack.c.l.b16 %v1601
    %v2002 = vunpack.c.h.b16 %v1601
    %v2003 = vunpack.c.l.b16 %v1602
    %v2004 = vunpack.c.h.b16 %v1602
    %v2005 = vunpack.c.l.b16 %v1603
    %v2006 = vunpack.c.h.b16 %v1603
    %v2007 = vunpack.c.l.b16 %v1604
    %v2008 = vunpack.c.h.b16 %v1604
    %v2009 = vunpack.c.l.b16 %v1605
    %v2010 = vunpack.c.h.b16 %v1605
    %v2011 = vunpack.c.l.b16 %v1606
    %v2012 = vunpack.c.h.b16 %v1606
    %v2013 = vpack.c.b16 %v1761, %v1757
    %v2014 = vpack.c.b16 %v1762, %v1758
    %v2015 = vpack.c.b16 %v1763, %v1759
    %v2016 = vpack.c.b16 %v1764, %v1760
    %v2017 = vpack.c.b16 %v1769, %v1765
    %v2018 = vpack.c.b16 %v1770, %v1766
    %v2019 = vpack.c.b16 %v1771, %v1767
    %v2020 = vpack.c.b16 %v1772, %v1768
    %v2021 = vpack.c.b16 %v1777, %v1773
    %v2022 = vpack.c.b16 %v1778, %v1774
    %v2023 = vpack.c.b16 %v1779, %v1775
    %v2024 = vpack.c.b16 %v1780, %v1776
    %v2025 = vpack.c.b16 %v1785, %v1781
    %v2026 = vpack.c.b16 %v1786, %v1782
    %v2027 = vpack.c.b16 %v1787, %v1783
    %v2028 = vpack.c.b16 %v1788, %v1784
    %v2029 = vpack.c.b16 %v1793, %v1789
    %v2030 = vpack.c.b16 %v1794, %v1790
    %v2031 = vpack.c.b16 %v1795, %v1791
    %v2032 = vpack.c.b16 %v1796, %v1792
    %v2033 = vpack.c.b16 %v1801, %v1797
    %v2034 = vpack.c.b16 %v1802, %v1798
    %v2035 = vpack.c.b16 %v1803, %v1799
    %v2036 = vpack.c.b16 %v1804, %v1800
    %v2037 = vpack.c.b16 %v1809, %v1805
    %v2038 = vpack.c.b16 %v1810, %v1806
    %v2039 = vpack.c.b16 %v1811, %v1807
    %v2040 = vpack.c.b16 %v1812, %v1808
    %v2041 = vpack.c.b16 %v1817, %v1813
    %v2042 = vpack.c.b16 %v1818, %v1814
    %v2043 = vpack.c.b16 %v1819, %v1815
    %v2044 = vpack.c.b16 %v1820, %v1816
    %v2045 = vpack.c.b16 %v1825, %v1821
    %v2046 = vpack.c.b16 %v1826, %v1822
    %v2047 = vpack.c.b16 %v1827, %v1823
    %v2048 = vpack.c.b16 %v1828, %v1824
    %v2049 = vpack.c.b16 %v1833, %v1829
    %v2050 = vpack.c.b16 %v1834, %v1830
    %v2051 = vpack.c.b16 %v1835, %v1831
    %v2052 = vpack.c.b16 %v1836, %v1832
    %v2053 = vpack.c.b16 %v1841, %v1837
    %v2054 = vpack.c.b16 %v1842, %v1838
    %v2055 = vpack.c.b16 %v1843, %v1839
    %v2056 = vpack.c.b16 %v1844, %v1840
    %v2057 = vpack.c.b16 %v1849, %v1845
    %v2058 = vpack.c.b16 %v1850, %v1846
    %v2059 = vpack.c.b16 %v1851, %v1847
    %v2060 = vpack.c.b16 %v1852, %v1848
    %v2061 = vpack.c.b16 %v1857, %v1853
    %v2062 = vpack.c.b16 %v1858, %v1854
    %v2063 = vpack.c.b16 %v1859, %v1855
    %v2064 = vpack.c.b16 %v1860, %v1856
    %v2065 = vpack.c.b16 %v1865, %v1861
    %v2066 = vpack.c.b16 %v1866, %v1862
    %v2067 = vpack.c.b16 %v1867, %v1863
    %v2068 = vpack.c.b16 %v1868, %v1864
    %v2069 = vpack.c.b16 %v1873, %v1869
    %v2070 = vpack.c.b16 %v1874, %v1870
    %v2071 = vpack.c.b16 %v1875, %v1871
    %v2072 = vpack.c.b16 %v1876, %v1872
    %v2073 = vpack.c.b16 %v1881, %v1877
    %v2074 = vpack.c.b16 %v1882, %v1878
    %v2075 = vpack.c.b16 %v1883, %v1879
    %v2076 = vpack.c.b16 %v1884, %v1880
    %v2077 = vpack.c.b16 %v1889, %v1885
    %v2078 = vpack.c.b16 %v1890, %v1886
    %v2079 = vpack.c.b16 %v1891, %v1887
    %v2080 = vpack.c.b16 %v1892, %v1888
    %v2081 = vpack.c.b16 %v1897, %v1893
    %v2082 = vpack.c.b16 %v1898, %v1894
    %v2083 = vpack.c.b16 %v1899, %v1895
    %v2084 = vpack.c.b16 %v1900, %v1896
    %v2085 = vpack.c.b16 %v1905, %v1901
    %v2086 = vpack.c.b16 %v1906, %v1902
    %v2087 = vpack.c.b16 %v1907, %v1903
    %v2088 = vpack.c.b16 %v1908, %v1904
    %v2089 = vpack.c.b16 %v1913, %v1909
    %v2090 = vpack.c.b16 %v1914, %v1910
    %v2091 = vpack.c.b16 %v1915, %v1911
    %v2092 = vpack.c.b16 %v1916, %v1912
    %v2093 = vpack.c.b16 %v1921, %v1917
    %v2094 = vpack.c.b16 %v1922, %v1918
    %v2095 = vpack.c.b16 %v1923, %v1919
    %v2096 = vpack.c.b16 %v1924, %v1920
    %v2097 = vpack.c.b16 %v1929, %v1925
    %v2098 = vpack.c.b16 %v1930, %v1926
    %v2099 = vpack.c.b16 %v1931, %v1927
    %v2100 = vpack.c.b16 %v1932, %v1928
    %v2101 = vpack.c.b16 %v1937, %v1933
    %v2102 = vpack.c.b16 %v1938, %v1934
    %v2103 = vpack.c.b16 %v1939, %v1935
    %v2104 = vpack.c.b16 %v1940, %v1936
    %v2105 = vpack.c.b16 %v1945, %v1941
    %v2106 = vpack.c.b16 %v1946, %v1942
    %v2107 = vpack.c.b16 %v1947, %v1943
    %v2108 = vpack.c.b16 %v1948, %v1944
    %v2109 = vpack.c.b16 %v1953, %v1949
    %v2110 = vpack.c.b16 %v1954, %v1950
    %v2111 = vpack.c.b16 %v1955, %v1951
    %v2112 = vpack.c.b16 %v1956, %v1952
    %v2113 = vpack.c.b16 %v1961, %v1957
    %v2114 = vpack.c.b16 %v1962, %v1958
    %v2115 = vpack.c.b16 %v1963, %v1959
    %v2116 = vpack.c.b16 %v1964, %v1960
    %v2117 = vpack.c.b16 %v1969, %v1965
    %v2118 = vpack.c.b16 %v1970, %v1966
    %v2119 = vpack.c.b16 %v1971, %v1967
    %v2120 = vpack.c.b16 %v1972, %v1968
    %v2121 = vpack.c.b16 %v1977, %v1973
    %v2122 = vpack.c.b16 %v1978, %v1974
    %v2123 = vpack.c.b16 %v1979, %v1975
    %v2124 = vpack.c.b16 %v1980, %v1976
    %v2125 = vpack.c.b16 %v1985, %v1981
    %v2126 = vpack.c.b16 %v1986, %v1982
    %v2127 = vpack.c.b16 %v1987, %v1983
    %v2128 = vpack.c.b16 %v1988, %v1984
    %v2129 = vpack.c.b16 %v1993, %v1989
    %v2130 = vpack.c.b16 %v1994, %v1990
    %v2131 = vpack.c.b16 %v1995, %v1991
    %v2132 = vpack.c.b16 %v1996, %v1992
    %v2133 = vpack.c.b16 %v2001, %v1997
    %v2134 = vpack.c.b16 %v2002, %v1998
    %v2135 = vpack.c.b16 %v2003, %v1999
    %v2136 = vpack.c.b16 %v2004, %v2000
    %v2137 = vpack.c.b16 %v2009, %v2005
    %v2138 = vpack.c.b16 %v2010, %v2006
    %v2139 = vpack.c.b16 %v2011, %v2007
    %v2140 = vpack.c.b16 %v2012, %v2008
    %2269 = vmatprep.subr.bf16.mxu0 %v2014
    %2270 = vmatpush1.bf16.msra.mxu0 %v2013
    %2271 = vmatprep.subr.bf16.mxu0 %v2018
    %2272 = vmatpush1.bf16.msra.mxu0 %v2017
    %2273 = vmatprep.subr.bf16.mxu0 %v2022
    %2274 = vmatpush1.bf16.msra.mxu0 %v2021
    %2275 = vmatprep.subr.bf16.mxu0 %v2026
    %2276 = vmatpush1.bf16.msra.mxu0 %v2025
    %2277 = vmatprep.subr.bf16.mxu0 %v2030
    %2278 = vmatpush1.bf16.msra.mxu0 %v2029
    %2279 = vmatprep.subr.bf16.mxu0 %v2034
    %2280 = vmatpush1.bf16.msra.mxu0 %v2033
    %2281 = vmatprep.subr.bf16.mxu0 %v2038
    %2282 = vmatpush1.bf16.msra.mxu0 %v2037
    %2283 = vmatprep.subr.bf16.mxu0 %v2042
    %2284 = vmatpush1.bf16.msra.mxu0 %v2041
    %2285 = vmatprep.subr.bf16.mxu0 %v2046
    %2286 = vmatpush1.bf16.msra.mxu0 %v2045
    %2287 = vmatprep.subr.bf16.mxu0 %v2050
    %2288 = vmatpush1.bf16.msra.mxu0 %v2049
    %2289 = vmatprep.subr.bf16.mxu0 %v2054
    %2290 = vmatpush1.bf16.msra.mxu0 %v2053
    %2291 = vmatprep.subr.bf16.mxu0 %v2058
    %2292 = vmatpush1.bf16.msra.mxu0 %v2057
    %2293 = vmatprep.subr.bf16.mxu0 %v2062
    %2294 = vmatpush1.bf16.msra.mxu0 %v2061
    %2295 = vmatprep.subr.bf16.mxu0 %v2066
    %2296 = vmatpush1.bf16.msra.mxu0 %v2065
    %2297 = vmatprep.subr.bf16.mxu0 %v2070
    %2298 = vmatpush1.bf16.msra.mxu0 %v2069
    %2299 = vmatprep.subr.bf16.mxu0 %v2074
    %2300 = vmatpush1.bf16.msra.mxu0 %v2073
    %2301 = vmatprep.mubr.bf16.mxu0 %v1476
    %2302 = vmatmul.mubr.bf16.gmra.mrb[0].mxu0 %v1475
    %v2303 = vpop.f32.mrb[0].mxu0
    %v2304 = vadd.f32 %v1612, %v2303
    %v2305 = vpop.f32.mrb[0].mxu0
    %v2306 = vadd.f32 %v1616, %v2305
    %v2307 = vpop.f32.mrb[0].mxu0
    %v2308 = vpop.f32.mrb[0].mxu0
    %2309 = vdwg.mxu0
    %2310 = vmatprep.subr.bf16.mxu0 %v2078
    %2311 = vmatpush1.bf16.msra.mxu0 %v2077
    %2312 = vmatprep.subr.bf16.mxu0 %v2082
    %2313 = vmatpush1.bf16.msra.mxu0 %v2081
    %2314 = vmatprep.subr.bf16.mxu0 %v2086
    %2315 = vmatpush1.bf16.msra.mxu0 %v2085
    %2316 = vmatprep.subr.bf16.mxu0 %v2090
    %2317 = vmatpush1.bf16.msra.mxu0 %v2089
    %2318 = vmatprep.subr.bf16.mxu0 %v2094
    %2319 = vmatpush1.bf16.msra.mxu0 %v2093
    %2320 = vmatprep.subr.bf16.mxu0 %v2098
    %2321 = vmatpush1.bf16.msra.mxu0 %v2097
    %2322 = vmatprep.subr.bf16.mxu0 %v2102
    %2323 = vmatpush1.bf16.msra.mxu0 %v2101
    %2324 = vmatprep.subr.bf16.mxu0 %v2106
    %2325 = vmatpush1.bf16.msra.mxu0 %v2105
    %2326 = vmatprep.subr.bf16.mxu0 %v2110
    %2327 = vmatpush1.bf16.msra.mxu0 %v2109
    %2328 = vmatprep.subr.bf16.mxu0 %v2114
    %2329 = vmatpush1.bf16.msra.mxu0 %v2113
    %2330 = vmatprep.subr.bf16.mxu0 %v2118
    %2331 = vmatpush1.bf16.msra.mxu0 %v2117
    %2332 = vmatprep.subr.bf16.mxu0 %v2122
    %2333 = vmatpush1.bf16.msra.mxu0 %v2121
    %2334 = vmatprep.subr.bf16.mxu0 %v2126
    %2335 = vmatpush1.bf16.msra.mxu0 %v2125
    %2336 = vmatprep.subr.bf16.mxu0 %v2130
    %2337 = vmatpush1.bf16.msra.mxu0 %v2129
    %2338 = vmatprep.subr.bf16.mxu0 %v2134
    %2339 = vmatpush1.bf16.msra.mxu0 %v2133
    %2340 = vmatprep.subr.bf16.mxu0 %v2138
    %2341 = vmatpush1.bf16.msra.mxu0 %v2137
    %2342 = vmatprep.mubr.bf16.mxu0 %v1478
    %2343 = vmatmul.mubr.bf16.gmra.mrb[0].mxu0 %v1477
    %v2344 = vpop.f32.mrb[0].mxu0
    %v2345 = vadd.f32 %v2304, %v2344
    %v2346 = vpop.f32.mrb[0].mxu0
    %v2347 = vadd.f32 %v2306, %v2346
    %v2348 = vpop.f32.mrb[0].mxu0
    %v2349 = vpop.f32.mrb[0].mxu0
    %2350 = vdwg.mxu0
    %2351 = vmatprep.subr.bf16.mxu0 %v2016
    %2352 = vmatpush1.bf16.msra.mxu0 %v2015
    %2353 = vmatprep.subr.bf16.mxu0 %v2020
    %2354 = vmatpush1.bf16.msra.mxu0 %v2019
    %2355 = vmatprep.subr.bf16.mxu0 %v2024
    %2356 = vmatpush1.bf16.msra.mxu0 %v2023
    %2357 = vmatprep.subr.bf16.mxu0 %v2028
    %2358 = vmatpush1.bf16.msra.mxu0 %v2027
    %2359 = vmatprep.subr.bf16.mxu0 %v2032
    %2360 = vmatpush1.bf16.msra.mxu0 %v2031
    %2361 = vmatprep.subr.bf16.mxu0 %v2036
    %2362 = vmatpush1.bf16.msra.mxu0 %v2035
    %2363 = vmatprep.subr.bf16.mxu0 %v2040
    %2364 = vmatpush1.bf16.msra.mxu0 %v2039
    %2365 = vmatprep.subr.bf16.mxu0 %v2044
    %2366 = vmatpush1.bf16.msra.mxu0 %v2043
    %2367 = vmatprep.subr.bf16.mxu0 %v2048
    %2368 = vmatpush1.bf16.msra.mxu0 %v2047
    %2369 = vmatprep.subr.bf16.mxu0 %v2052
    %2370 = vmatpush1.bf16.msra.mxu0 %v2051
    %2371 = vmatprep.subr.bf16.mxu0 %v2056
    %2372 = vmatpush1.bf16.msra.mxu0 %v2055
    %2373 = vmatprep.subr.bf16.mxu0 %v2060
    %2374 = vmatpush1.bf16.msra.mxu0 %v2059
    %2375 = vmatprep.subr.bf16.mxu0 %v2064
    %2376 = vmatpush1.bf16.msra.mxu0 %v2063
    %2377 = vmatprep.subr.bf16.mxu0 %v2068
    %2378 = vmatpush1.bf16.msra.mxu0 %v2067
    %2379 = vmatprep.subr.bf16.mxu0 %v2072
    %2380 = vmatpush1.bf16.msra.mxu0 %v2071
    %2381 = vmatprep.subr.bf16.mxu0 %v2076
    %2382 = vmatpush1.bf16.msra.mxu0 %v2075
    %2383 = vmatprep.mubr.bf16.mxu0 %v1476
    %2384 = vmatmul.mubr.bf16.gmra.mrb[0].mxu0 %v1475
    %v2385 = vpop.f32.mrb[0].mxu0
    %v2386 = vadd.f32 %v1620, %v2385
    %v2387 = vpop.f32.mrb[0].mxu0
    %v2388 = vadd.f32 %v1624, %v2387
    %v2389 = vpop.f32.mrb[0].mxu0
    %v2390 = vpop.f32.mrb[0].mxu0
    %2391 = vdwg.mxu0
    %2392 = vmatprep.subr.bf16.mxu0 %v2080
    %2393 = vmatpush1.bf16.msra.mxu0 %v2079
    %2394 = vmatprep.subr.bf16.mxu0 %v2084
    %2395 = vmatpush1.bf16.msra.mxu0 %v2083
    %2396 = vmatprep.subr.bf16.mxu0 %v2088
    %2397 = vmatpush1.bf16.msra.mxu0 %v2087
    %2398 = vmatprep.subr.bf16.mxu0 %v2092
    %2399 = vmatpush1.bf16.msra.mxu0 %v2091
    %2400 = vmatprep.subr.bf16.mxu0 %v2096
    %2401 = vmatpush1.bf16.msra.mxu0 %v2095
    %2402 = vmatprep.subr.bf16.mxu0 %v2100
    %2403 = vmatpush1.bf16.msra.mxu0 %v2099
    %2404 = vmatprep.subr.bf16.mxu0 %v2104
    %2405 = vmatpush1.bf16.msra.mxu0 %v2103
    %2406 = vmatprep.subr.bf16.mxu0 %v2108
    %2407 = vmatpush1.bf16.msra.mxu0 %v2107
    %2408 = vmatprep.subr.bf16.mxu0 %v2112
    %2409 = vmatpush1.bf16.msra.mxu0 %v2111
    %2410 = vmatprep.subr.bf16.mxu0 %v2116
    %2411 = vmatpush1.bf16.msra.mxu0 %v2115
    %2412 = vmatprep.subr.bf16.mxu0 %v2120
    %2413 = vmatpush1.bf16.msra.mxu0 %v2119
    %2414 = vmatprep.subr.bf16.mxu0 %v2124
    %2415 = vmatpush1.bf16.msra.mxu0 %v2123
    %2416 = vmatprep.subr.bf16.mxu0 %v2128
    %2417 = vmatpush1.bf16.msra.mxu0 %v2127
    %2418 = vmatprep.subr.bf16.mxu0 %v2132
    %2419 = vmatpush1.bf16.msra.mxu0 %v2131
    %2420 = vmatprep.subr.bf16.mxu0 %v2136
    %2421 = vmatpush1.bf16.msra.mxu0 %v2135
    %2422 = vmatprep.subr.bf16.mxu0 %v2140
    %2423 = vmatpush1.bf16.msra.mxu0 %v2139
    %2424 = vmatprep.mubr.bf16.mxu0 %v1478
    %2425 = vmatmul.mubr.bf16.gmra.mrb[0].mxu0 %v1477
    %v2426 = vpop.f32.mrb[0].mxu0
    %v2427 = vadd.f32 %v2386, %v2426
    %v2428 = vpop.f32.mrb[0].mxu0
    %v2429 = vadd.f32 %v2388, %v2428
    %v2430 = vpop.f32.mrb[0].mxu0
    %v2431 = vpop.f32.mrb[0].mxu0
    %2432 = vdwg.mxu0
    %v2433 = vmax.f32 %v2345, 0.0
    %v2434 = vmax.f32 %v2347, 0.0
    %v2435 = vmax.f32 %v2427, 0.0
    %v2436 = vmax.f32 %v2429, 0.0
    %v2437 = vpack.c.bf16 %v2433, %v2433
    %v2438 = vpack.c.bf16 %v2434, %v2434
    %v2439 = vpack.c.bf16 %v2435, %v2435
    %v2440 = vpack.c.bf16 %v2436, %v2436
    %v2441 = vld [vmem:[#allocation13] sm:$0xf]
    %v2442 = vld [vmem:[#allocation13 + $0x4] sm:$0xf]
    %v2443 = vld [vmem:[#allocation13 + $0x8] sm:$0xf]
    %v2444 = vld [vmem:[#allocation13 + $0xc] sm:$0xf]
    %v2445 = vld [vmem:[#allocation13 + $0x10] sm:$0xf]
    %v2446 = vld [vmem:[#allocation13 + $0x14] sm:$0xf]
    %v2447 = vld [vmem:[#allocation13 + $0x18] sm:$0xf]
    %v2448 = vld [vmem:[#allocation13 + $0x1c] sm:$0xf]
    %v2449 = vld [vmem:[#allocation13 + $0x20] sm:$0xf]
    %v2450 = vld [vmem:[#allocation13 + $0x24] sm:$0xf]
    %v2451 = vld [vmem:[#allocation13 + $0x28] sm:$0xf]
    %v2452 = vld [vmem:[#allocation13 + $0x2c] sm:$0xf]
    %v2453 = vld [vmem:[#allocation13 + $0x30] sm:$0xf]
    %v2454 = vld [vmem:[#allocation13 + $0x34] sm:$0xf]
    %v2455 = vld [vmem:[#allocation13 + $0x38] sm:$0xf]
    %v2456 = vld [vmem:[#allocation13 + $0x3c] sm:$0xf]
    %v2457 = vld [vmem:[#allocation13 + $0x40] sm:$0xf]
    %v2458 = vld [vmem:[#allocation13 + $0x44] sm:$0xf]
    %v2459 = vld [vmem:[#allocation13 + $0x48] sm:$0xf]
    %v2460 = vld [vmem:[#allocation13 + $0x4c] sm:$0xf]
    %v2461 = vld [vmem:[#allocation13 + $0x50] sm:$0xf]
    %v2462 = vld [vmem:[#allocation13 + $0x54] sm:$0xf]
    %v2463 = vld [vmem:[#allocation13 + $0x58] sm:$0xf]
    %v2464 = vld [vmem:[#allocation13 + $0x5c] sm:$0xf]
    %v2465 = vld [vmem:[#allocation13 + $0x60] sm:$0xf]
    %v2466 = vld [vmem:[#allocation13 + $0x64] sm:$0xf]
    %v2467 = vld [vmem:[#allocation13 + $0x68] sm:$0xf]
    %v2468 = vld [vmem:[#allocation13 + $0x6c] sm:$0xf]
    %v2469 = vld [vmem:[#allocation13 + $0x70] sm:$0xf]
    %v2470 = vld [vmem:[#allocation13 + $0x74] sm:$0xf]
    %v2471 = vld [vmem:[#allocation13 + $0x78] sm:$0xf]
    %v2472 = vld [vmem:[#allocation13 + $0x7c] sm:$0xf]
    %v2473 = vld [vmem:[#allocation13 + $0x80] sm:$0xf]
    %v2474 = vld [vmem:[#allocation13 + $0x84] sm:$0xf]
    %v2475 = vld [vmem:[#allocation13 + $0x88] sm:$0xf]
    %v2476 = vld [vmem:[#allocation13 + $0x8c] sm:$0xf]
    %v2477 = vld [vmem:[#allocation13 + $0x90] sm:$0xf]
    %v2478 = vld [vmem:[#allocation13 + $0x94] sm:$0xf]
    %v2479 = vld [vmem:[#allocation13 + $0x98] sm:$0xf]
    %v2480 = vld [vmem:[#allocation13 + $0x9c] sm:$0xf]
    %v2481 = vld [vmem:[#allocation13 + $0xa0] sm:$0xf]
    %v2482 = vld [vmem:[#allocation13 + $0xa4] sm:$0xf]
    %v2483 = vld [vmem:[#allocation13 + $0xa8] sm:$0xf]
    %v2484 = vld [vmem:[#allocation13 + $0xac] sm:$0xf]
    %v2485 = vld [vmem:[#allocation13 + $0xb0] sm:$0xf]
    %v2486 = vld [vmem:[#allocation13 + $0xb4] sm:$0xf]
    %v2487 = vld [vmem:[#allocation13 + $0xb8] sm:$0xf]
    %v2488 = vld [vmem:[#allocation13 + $0xbc] sm:$0xf]
    %v2489 = vld [vmem:[#allocation13 + $0xc0] sm:$0xf]
    %v2490 = vld [vmem:[#allocation13 + $0xc4] sm:$0xf]
    %v2491 = vld [vmem:[#allocation13 + $0xc8] sm:$0xf]
    %v2492 = vld [vmem:[#allocation13 + $0xcc] sm:$0xf]
    %v2493 = vld [vmem:[#allocation13 + $0xd0] sm:$0xf]
    %v2494 = vld [vmem:[#allocation13 + $0xd4] sm:$0xf]
    %v2495 = vld [vmem:[#allocation13 + $0xd8] sm:$0xf]
    %v2496 = vld [vmem:[#allocation13 + $0xdc] sm:$0xf]
    %v2497 = vld [vmem:[#allocation13 + $0xe0] sm:$0xf]
    %v2498 = vld [vmem:[#allocation13 + $0xe4] sm:$0xf]
    %v2499 = vld [vmem:[#allocation13 + $0xe8] sm:$0xf]
    %v2500 = vld [vmem:[#allocation13 + $0xec] sm:$0xf]
    %v2501 = vld [vmem:[#allocation13 + $0xf0] sm:$0xf]
    %v2502 = vld [vmem:[#allocation13 + $0xf4] sm:$0xf]
    %v2503 = vld [vmem:[#allocation13 + $0xf8] sm:$0xf]
    %v2504 = vld [vmem:[#allocation13 + $0xfc] sm:$0xf]
    %v2505 = vld [vmem:[%s10] sm:$0x1]
    %v2507 = vlaneseq
    %v2508 = vshrl.u32 %v2507, 7
    %v2509 = vsub.s32 0, %v2508
    %v2510 = vrot.slane %v2505, %v2509
    %v2576 = vunpack.c.l.b16 %v2441
    %v2577 = vunpack.c.l.b16 %v2442
    %v2578 = vunpack.c.l.b16 %v2443
    %v2579 = vunpack.c.l.b16 %v2444
    %v2580 = vunpack.c.l.b16 %v2445
    %v2581 = vunpack.c.l.b16 %v2446
    %v2582 = vunpack.c.l.b16 %v2447
    %v2583 = vunpack.c.l.b16 %v2448
    %v2584 = vunpack.c.l.b16 %v2449
    %v2585 = vunpack.c.l.b16 %v2450
    %v2586 = vunpack.c.l.b16 %v2451
    %v2587 = vunpack.c.l.b16 %v2452
    %v2588 = vunpack.c.l.b16 %v2453
    %v2589 = vunpack.c.l.b16 %v2454
    %v2590 = vunpack.c.l.b16 %v2455
    %v2591 = vunpack.c.l.b16 %v2456
    %v2592 = vunpack.c.l.b16 %v2457
    %v2593 = vunpack.c.l.b16 %v2458
    %v2594 = vunpack.c.l.b16 %v2459
    %v2595 = vunpack.c.l.b16 %v2460
    %v2596 = vunpack.c.l.b16 %v2461
    %v2597 = vunpack.c.l.b16 %v2462
    %v2598 = vunpack.c.l.b16 %v2463
    %v2599 = vunpack.c.l.b16 %v2464
    %v2600 = vunpack.c.l.b16 %v2465
    %v2601 = vunpack.c.l.b16 %v2466
    %v2602 = vunpack.c.l.b16 %v2467
    %v2603 = vunpack.c.l.b16 %v2468
    %v2604 = vunpack.c.l.b16 %v2469
    %v2605 = vunpack.c.l.b16 %v2470
    %v2606 = vunpack.c.l.b16 %v2471
    %v2607 = vunpack.c.l.b16 %v2472
    %v2608 = vunpack.c.l.b16 %v2473
    %v2609 = vunpack.c.l.b16 %v2474
    %v2610 = vunpack.c.l.b16 %v2475
    %v2611 = vunpack.c.l.b16 %v2476
    %v2612 = vunpack.c.l.b16 %v2477
    %v2613 = vunpack.c.l.b16 %v2478
    %v2614 = vunpack.c.l.b16 %v2479
    %v2615 = vunpack.c.l.b16 %v2480
    %v2616 = vunpack.c.l.b16 %v2481
    %v2617 = vunpack.c.l.b16 %v2482
    %v2618 = vunpack.c.l.b16 %v2483
    %v2619 = vunpack.c.l.b16 %v2484
    %v2620 = vunpack.c.l.b16 %v2485
    %v2621 = vunpack.c.l.b16 %v2486
    %v2622 = vunpack.c.l.b16 %v2487
    %v2623 = vunpack.c.l.b16 %v2488
    %v2624 = vunpack.c.l.b16 %v2489
    %v2625 = vunpack.c.l.b16 %v2490
    %v2626 = vunpack.c.l.b16 %v2491
    %v2627 = vunpack.c.l.b16 %v2492
    %v2628 = vunpack.c.l.b16 %v2493
    %v2629 = vunpack.c.l.b16 %v2494
    %v2630 = vunpack.c.l.b16 %v2495
    %v2631 = vunpack.c.l.b16 %v2496
    %v2632 = vunpack.c.l.b16 %v2497
    %v2633 = vunpack.c.l.b16 %v2498
    %v2634 = vunpack.c.l.b16 %v2499
    %v2635 = vunpack.c.l.b16 %v2500
    %v2636 = vunpack.c.l.b16 %v2501
    %v2637 = vunpack.c.l.b16 %v2502
    %v2638 = vunpack.c.l.b16 %v2503
    %v2639 = vunpack.c.l.b16 %v2504
    %v2640 = vpack.c.b16 %v2577, %v2576
    %v2641 = vpack.c.b16 %v2579, %v2578
    %v2642 = vpack.c.b16 %v2581, %v2580
    %v2643 = vpack.c.b16 %v2583, %v2582
    %v2644 = vpack.c.b16 %v2585, %v2584
    %v2645 = vpack.c.b16 %v2587, %v2586
    %v2646 = vpack.c.b16 %v2589, %v2588
    %v2647 = vpack.c.b16 %v2591, %v2590
    %v2648 = vpack.c.b16 %v2593, %v2592
    %v2649 = vpack.c.b16 %v2595, %v2594
    %v2650 = vpack.c.b16 %v2597, %v2596
    %v2651 = vpack.c.b16 %v2599, %v2598
    %v2652 = vpack.c.b16 %v2601, %v2600
    %v2653 = vpack.c.b16 %v2603, %v2602
    %v2654 = vpack.c.b16 %v2605, %v2604
    %v2655 = vpack.c.b16 %v2607, %v2606
    %v2656 = vpack.c.b16 %v2609, %v2608
    %v2657 = vpack.c.b16 %v2611, %v2610
    %v2658 = vpack.c.b16 %v2613, %v2612
    %v2659 = vpack.c.b16 %v2615, %v2614
    %v2660 = vpack.c.b16 %v2617, %v2616
    %v2661 = vpack.c.b16 %v2619, %v2618
    %v2662 = vpack.c.b16 %v2621, %v2620
    %v2663 = vpack.c.b16 %v2623, %v2622
    %v2664 = vpack.c.b16 %v2625, %v2624
    %v2665 = vpack.c.b16 %v2627, %v2626
    %v2666 = vpack.c.b16 %v2629, %v2628
    %v2667 = vpack.c.b16 %v2631, %v2630
    %v2668 = vpack.c.b16 %v2633, %v2632
    %v2669 = vpack.c.b16 %v2635, %v2634
    %v2670 = vpack.c.b16 %v2637, %v2636
    %v2671 = vpack.c.b16 %v2639, %v2638
    %2704 = vmatprep.subr.bf16.mxu0 0
    %2705 = vmatpush1.bf16.msra.mxu0 %v2640
    %2706 = vmatprep.subr.bf16.mxu0 0
    %2707 = vmatpush1.bf16.msra.mxu0 %v2641
    %2708 = vmatprep.subr.bf16.mxu0 0
    %2709 = vmatpush1.bf16.msra.mxu0 %v2642
    %2710 = vmatprep.subr.bf16.mxu0 0
    %2711 = vmatpush1.bf16.msra.mxu0 %v2643
    %2712 = vmatprep.subr.bf16.mxu0 0
    %2713 = vmatpush1.bf16.msra.mxu0 %v2644
    %2714 = vmatprep.subr.bf16.mxu0 0
    %2715 = vmatpush1.bf16.msra.mxu0 %v2645
    %2716 = vmatprep.subr.bf16.mxu0 0
    %2717 = vmatpush1.bf16.msra.mxu0 %v2646
    %2718 = vmatprep.subr.bf16.mxu0 0
    %2719 = vmatpush1.bf16.msra.mxu0 %v2647
    %2720 = vmatprep.subr.bf16.mxu0 0
    %2721 = vmatpush1.bf16.msra.mxu0 %v2648
    %2722 = vmatprep.subr.bf16.mxu0 0
    %2723 = vmatpush1.bf16.msra.mxu0 %v2649
    %2724 = vmatprep.subr.bf16.mxu0 0
    %2725 = vmatpush1.bf16.msra.mxu0 %v2650
    %2726 = vmatprep.subr.bf16.mxu0 0
    %2727 = vmatpush1.bf16.msra.mxu0 %v2651
    %2728 = vmatprep.subr.bf16.mxu0 0
    %2729 = vmatpush1.bf16.msra.mxu0 %v2652
    %2730 = vmatprep.subr.bf16.mxu0 0
    %2731 = vmatpush1.bf16.msra.mxu0 %v2653
    %2732 = vmatprep.subr.bf16.mxu0 0
    %2733 = vmatpush1.bf16.msra.mxu0 %v2654
    %2734 = vmatprep.subr.bf16.mxu0 0
    %2735 = vmatpush1.bf16.msra.mxu0 %v2655
    %2736 = vmatprep.mubr.bf16.mxu0 %v2438
    %2737 = vmatmul.mubr.bf16.gmra.mrb[0].mxu0 %v2437
    %v2738 = vpop.f32.mrb[0].mxu0
    %v2739 = vadd.f32 %v2510, %v2738
    %v2740 = vpop.f32.mrb[0].mxu0
    %v2741 = vpop.f32.mrb[0].mxu0
    %v2742 = vpop.f32.mrb[0].mxu0
    %2743 = vdwg.mxu0
    %2744 = vmatprep.subr.bf16.mxu0 0
    %2745 = vmatpush1.bf16.msra.mxu0 %v2656
    %2746 = vmatprep.subr.bf16.mxu0 0
    %2747 = vmatpush1.bf16.msra.mxu0 %v2657
    %2748 = vmatprep.subr.bf16.mxu0 0
    %2749 = vmatpush1.bf16.msra.mxu0 %v2658
    %2750 = vmatprep.subr.bf16.mxu0 0
    %2751 = vmatpush1.bf16.msra.mxu0 %v2659
    %2752 = vmatprep.subr.bf16.mxu0 0
    %2753 = vmatpush1.bf16.msra.mxu0 %v2660
    %2754 = vmatprep.subr.bf16.mxu0 0
    %2755 = vmatpush1.bf16.msra.mxu0 %v2661
    %2756 = vmatprep.subr.bf16.mxu0 0
    %2757 = vmatpush1.bf16.msra.mxu0 %v2662
    %2758 = vmatprep.subr.bf16.mxu0 0
    %2759 = vmatpush1.bf16.msra.mxu0 %v2663
    %2760 = vmatprep.subr.bf16.mxu0 0
    %2761 = vmatpush1.bf16.msra.mxu0 %v2664
    %2762 = vmatprep.subr.bf16.mxu0 0
    %2763 = vmatpush1.bf16.msra.mxu0 %v2665
    %2764 = vmatprep.subr.bf16.mxu0 0
    %2765 = vmatpush1.bf16.msra.mxu0 %v2666
    %2766 = vmatprep.subr.bf16.mxu0 0
    %2767 = vmatpush1.bf16.msra.mxu0 %v2667
    %2768 = vmatprep.subr.bf16.mxu0 0
    %2769 = vmatpush1.bf16.msra.mxu0 %v2668
    %2770 = vmatprep.subr.bf16.mxu0 0
    %2771 = vmatpush1.bf16.msra.mxu0 %v2669
    %2772 = vmatprep.subr.bf16.mxu0 0
    %2773 = vmatpush1.bf16.msra.mxu0 %v2670
    %2774 = vmatprep.subr.bf16.mxu0 0
    %2775 = vmatpush1.bf16.msra.mxu0 %v2671
    %2776 = vmatprep.mubr.bf16.mxu0 %v2440
    %2777 = vmatmul.mubr.bf16.gmra.mrb[0].mxu0 %v2439
    %v2778 = vpop.f32.mrb[0].mxu0
    %v2779 = vadd.f32 %v2739, %v2778
    %v2780 = vpop.f32.mrb[0].mxu0
    %v2781 = vpop.f32.mrb[0].mxu0
    %v2782 = vpop.f32.mrb[0].mxu0
    %2783 = vdwg.mxu0
    %v2784 = vtanh.pop %v2779
    %2785 = vst [vmem:[#allocation14] sm:$0xff] %v2784
    // Predicated region
    $region74: #{tpu_custom_call.1} parent=1 // pred_check
      _
    $region75: #{tpu_custom_call.1} parent=1 // pred_check_branch
      %2787 = sbr.rel (0) target = $region77
    $region76: #{tpu_custom_call.1} parent=1 // pred_region
      %s2789 = ssub.s32 128, 128
      %2790 = vsyncadd [#allocation4], %s2789
      %s2792 = sshll.u32 [#allocation14], 4
      %s2793 = int_to_ptr.vmem [resolvable:$true] %s2792
      %2795 = dma.vmem_to_hbm [thread:$0]  %s2793, 128, %s11, [#allocation4]
    $region77: #{tpu_custom_call.1} parent=1 // pred_fallthru
      _
    // Predicated region
    $region78: #{tpu_custom_call.1} parent=1 // pred_check
      _
    $region79: #{tpu_custom_call.1} parent=1 // pred_check_branch
      %2797 = sbr.rel (0) target = $region81
    $region80: #{tpu_custom_call.1} parent=1 // pred_region
      %2798 = dma.done [#allocation4], 128
    $region81: #{tpu_custom_call.1} parent=1 // pred_fallthru
      _
    %2799 = vsyncpa [#allocation3], 1
    %2800 = vsyncpa [#allocation6], 1
    %2801 = vsyncpa [#allocation9], 1
    %2802 = vsyncpa [#allocation12], 1
    %2803 = vsyncpa [#allocation4], 1

</llo_original>
